<compile_context>
chip_gen: v7x
topology: tpu7x:2x2x1
jax: 0.10.0
libtpu: 0.0.40
codegen_flags: <defaults>
</compile_context>

<pallas_src>
import numpy as np
import jax
import jax.numpy as jnp
from jax.experimental import pallas as pl
from jax.experimental.pallas import tpu as pltpu

LANES = 128
SUBLANES = 8
_TILE_CANDIDATES = (1024, 512, 256)      # rows per block for large tensors
_VMEM_INPUT_BUDGET = 12 * 1024 * 1024    # stay under v5e's 16 MiB default scoped VMEM


def _ceil_div(a, b):
    return -(-a // b)


def _make_clip_imap(start, nblk):
    # Before this tensor's range -> block 0; inside -> advancing; after -> last
    # block.  Constant indices are copy-elided by Pallas, so each tile is DMA'd
    # exactly once.
    def imap(j, *_):
        return (jnp.minimum(jnp.maximum(j - start, 0), nblk - 1), 0)
    return imap


def _const_imap(j, *_):
    return (0, 0)


def _make_kernel(num_t, block_rows, aligned8, needs_mask):
    def kernel(tid_ref, vrows_ref, first_ref, last_ref, shift_ref, nelem_ref, *rest):
        x_refs = rest[:num_t]
        o_ref = rest[num_t]
        s_ref = rest[num_t + 1]
        ss_ref = rest[num_t + 2]

        j = pl.program_id(0)
        tid = tid_ref[j]

        @pl.when(first_ref[j] == 1)
        def _():
            s_ref[...] = jnp.zeros_like(s_ref)
            ss_ref[...] = jnp.zeros_like(ss_ref)

        # Exactly one branch is live per grid step (blocks never span tensors).
        for k in range(num_t):
            @pl.when(tid == k)
            def _(k=k):
                x = x_refs[k][...].astype(jnp.float32) - shift_ref[k]
                if needs_mask[k]:
                    # Partial tail tile: rows past vrows hold stale VMEM -> zero them.
                    rid = jax.lax.broadcasted_iota(jnp.int32, x.shape, 0)
                    x = jnp.where(rid < vrows_ref[j], x, 0.0)
                if aligned8[k]:
                    # Pure-VALU accumulation into a full (8,128) vreg accumulator.
                    x3 = x.reshape(block_rows[k] // SUBLANES, SUBLANES, LANES)
                    s_ref[...] += jnp.sum(x3, axis=0)
                    ss_ref[...] += jnp.sum(x3 * x3, axis=0)
                else:
                    # Small tensors with odd row counts: collapse rows, add into row 0.
                    s_ref[0:1, :] += jnp.sum(x, axis=0, keepdims=True)
                    ss_ref[0:1, :] += jnp.sum(x * x, axis=0, keepdims=True)

        @pl.when(last_ref[j] == 1)
        def _():
            n = nelem_ref[tid].astype(jnp.float32)
            c = shift_ref[tid]
            s = jnp.sum(s_ref[...], keepdims=True)      # (1,1) sublane+lane collapse
            ss = jnp.sum(ss_ref[...], keepdims=True)
            mean = c + s / n
            # Shifted one-pass unbiased variance (ddof=1), clamped >= 0.
            var = jnp.maximum((ss - s * s / n) / (n - 1.0), 0.0)
            res = mean + jnp.sqrt(var)                   # NaN when n == 1 (torch.std)
            o_ref[...] = jnp.broadcast_to(res.reshape(1, 1, 1), o_ref.shape)

    return kernel


def _build_runner(spec_key):
    """spec_key: tuple of ((shape...), dtype_str) per tensor -> jitted runner."""
    num_t = len(spec_key)

    n_stats, rows, ragged, itemsizes = [], [], [], []
    for shp, dt in spec_key:
        n = int(np.prod(shp, dtype=np.int64)) if len(shp) else 1
        ns = max(1, n)                         # empty tensors -> NaN through var
        r = _ceil_div(ns, LANES)
        n_stats.append(ns)
        rows.append(r)
        ragged.append(ns != r * LANES)
        itemsizes.append(jnp.dtype(dt).itemsize)

    # Largest row tile whose double-buffered input blocks fit the VMEM budget.
    tile_r = _TILE_CANDIDATES[-1]
    for cand in _TILE_CANDIDATES:
        need = sum(2 * min(cand, r) * LANES * isz for r, isz in zip(rows, itemsizes))
        if need <= _VMEM_INPUT_BUDGET:
            tile_r = cand
            break

    block_rows = [r if r < tile_r else tile_r for r in rows]
    nblk = [_ceil_div(r, tile_r) for r in rows]
    start = np.concatenate([[0], np.cumsum(nblk)[:-1]]).astype(np.int64)
    total_blocks = int(sum(nblk))
    aligned8 = [br % SUBLANES == 0 for br in block_rows]
    needs_mask = [rows[k] > tile_r and rows[k] % tile_r != 0 for k in range(num_t)]

    # Per-block SMEM tables for the flat grid.
    tid_l, vrows_l, first_l, last_l = [], [], [], []
    for k in range(num_t):
        for b in range(nblk[k]):
            tid_l.append(k)
            vrows_l.append(min(block_rows[k], rows[k] - b * tile_r))
            first_l.append(1 if b == 0 else 0)
            last_l.append(1 if b == nblk[k] - 1 else 0)

    tid_a = jnp.asarray(tid_l, dtype=jnp.int32)
    vrows_a = jnp.asarray(vrows_l, dtype=jnp.int32)
    first_a = jnp.asarray(first_l, dtype=jnp.int32)
    last_a = jnp.asarray(last_l, dtype=jnp.int32)
    nelem_a = jnp.asarray(n_stats, dtype=jnp.int32)

    in_specs = []
    for k in range(num_t):
        imap = _const_imap if nblk[k] == 1 else _make_clip_imap(int(start[k]), nblk[k])
        in_specs.append(pl.BlockSpec((block_rows[k], LANES), imap))

    grid_spec = pltpu.PrefetchScalarGridSpec(
        num_scalar_prefetch=6,
        grid=(total_blocks,),
        in_specs=in_specs,
        out_specs=pl.BlockSpec((1, SUBLANES, LANES),
                               lambda j, tid_ref, *_: (tid_ref[j], 0, 0)),
        scratch_shapes=[pltpu.VMEM((SUBLANES, LANES), jnp.float32),
                        pltpu.VMEM((SUBLANES, LANES), jnp.float32)],
    )

    buf_bytes = sum(2 * block_rows[k] * LANES * itemsizes[k] for k in range(num_t))
    vmem_limit = int(min(max(2 * buf_bytes + (2 << 20), 16 << 20), 40 << 20))

    in_bytes = sum(rows[k] * LANES * itemsizes[k] for k in range(num_t))
    cost = pl.CostEstimate(
        flops=5 * int(sum(n_stats)),
        transcendentals=num_t,
        bytes_accessed=int(in_bytes + num_t * SUBLANES * LANES * 4
                           + 6 * total_blocks * 4),
    )

    call = pl.pallas_call(
        _make_kernel(num_t, block_rows, aligned8, needs_mask),
        out_shape=jax.ShapeDtypeStruct((num_t, SUBLANES, LANES), jnp.float32),
        grid_spec=grid_spec,
        compiler_params=pltpu.CompilerParams(
            dimension_semantics=("arbitrary",),   # sequential reduction stream
            vmem_limit_bytes=vmem_limit,
        ),
        cost_estimate=cost,
    )

    rows_t = tuple(rows)
    ragged_t = tuple(ragged)

    @jax.jit
    def run(*tensors):
        slabs, shifts = [], []
        for k, t in enumerate(tensors):
            flat = jnp.ravel(t)
            if ragged_t[k]:
                # Lane-ragged: tiny (<128 elem) zero pad; shift = 0 so padding
                # contributes nothing to the shifted sums.
                flat = jnp.pad(flat, (0, rows_t[k] * LANES - flat.shape[0]))
                shifts.append(jnp.zeros((), jnp.float32))
            else:
                # Free bitcast reshape; shift about the first element to avoid
                # cancellation in the one-pass variance.
                shifts.append(flat[0].astype(jnp.float32))
            slabs.append(flat.reshape(rows_t[k], LANES))
        shift_a = jnp.stack(shifts)
        out = call(tid_a, vrows_a, first_a, last_a, shift_a, nelem_a, *slabs)
        return out[:, 0, 0]

    return run


_RUNNER_CACHE = {}


def pt_module_forward(inputs):
    """Mirrors PtModule.forward: list of tensors -> list of scalars mean+std."""
    if not inputs:
        return []
    key = tuple((tuple(int(d) for d in t.shape), str(jnp.dtype(t.dtype)))
                for t in inputs)
    runner = _RUNNER_CACHE.get(key)
    if runner is None:
        runner = _build_runner(key)
        _RUNNER_CACHE[key] = runner
    res = runner(*inputs)
    return [res[k] for k in range(len(inputs))]


if __name__ == "__main__":
    key = jax.random.PRNGKey(0)
    k1, k2, k3, k4, k5 = jax.random.split(key, 5)
    inputs = [
        jax.random.normal(k1, (2, 4, 16, 16), dtype=jnp.float32),
        jax.random.normal(k2, (8, 32), dtype=jnp.float32) * 3.0 + 50.0,   # big DC offset
        jax.random.uniform(k3, (4, 16, 8), dtype=jnp.float32),
        jax.random.normal(k4, (16, 100), dtype=jnp.float32).astype(jnp.bfloat16),  # ragged + bf16
        jax.random.normal(k5, (400, 400), dtype=jnp.float32) * 0.5 + 7.0,  # multi-block + masked tail
    ]

    outs = pt_module_forward(inputs)
    outs = [jax.block_until_ready(o) for o in outs]

    # Reference check (pure JAX, unbiased std like torch.std).
    for o, x in zip(outs, inputs):
        xf = x.astype(jnp.float32)
        ref = jnp.mean(xf) + jnp.std(xf, ddof=1)
        assert jnp.allclose(o, ref, rtol=1e-4, atol=1e-4), (o, ref)

    print("KERNEL_OK")
</pallas_src>

<mosaic_0001>
module attributes {stable_mosaic.version = 11 : i64} {
  func.func @kernel(%arg0: i32, %arg1: memref<6xi32, #tpu.memory_space<smem>>, %arg2: memref<6xi32, #tpu.memory_space<smem>>, %arg3: memref<6xi32, #tpu.memory_space<smem>>, %arg4: memref<6xi32, #tpu.memory_space<smem>>, %arg5: memref<5xf32, #tpu.memory_space<smem>>, %arg6: memref<5xi32, #tpu.memory_space<smem>>, %arg7: memref<16x128xf32, #tpu.memory_space<vmem>>, %arg8: memref<2x128xf32, #tpu.memory_space<vmem>>, %arg9: memref<4x128xf32, #tpu.memory_space<vmem>>, %arg10: memref<13x128xbf16, #tpu.memory_space<vmem>>, %arg11: memref<1024x128xf32, #tpu.memory_space<vmem>>, %arg12: memref<1x8x128xf32, #tpu.memory_space<vmem>>, %arg13: memref<8x128xf32, #tpu.memory_space<vmem>>, %arg14: memref<8x128xf32, #tpu.memory_space<vmem>>) attributes {dimension_semantics = [#tpu.dimension_semantics<arbitrary>], iteration_bounds = array<i64: 6>, scalar_prefetch = 6 : i64, scratch_operands = 2 : i64, tpu.core_type = #tpu.core_type<tc>, window_params = [{pipeline_mode = #tpu.pipeline_mode<synchronous>, transform_indices = @transform_0, window_bounds = array<i64: 16, 128>}, {pipeline_mode = #tpu.pipeline_mode<synchronous>, transform_indices = @transform_1, window_bounds = array<i64: 2, 128>}, {pipeline_mode = #tpu.pipeline_mode<synchronous>, transform_indices = @transform_2, window_bounds = array<i64: 4, 128>}, {pipeline_mode = #tpu.pipeline_mode<synchronous>, transform_indices = @transform_3, window_bounds = array<i64: 13, 128>}, {transform_indices = @transform_4, window_bounds = array<i64: 1024, 128>}, {transform_indices = @transform_5, window_bounds = array<i64: 1, 8, 128>}]} {
    %0 = arith.index_cast %arg0 : i32 to index
    %1 = memref.load %arg1[%0] : memref<6xi32, #tpu.memory_space<smem>>
    %2 = arith.index_cast %arg0 : i32 to index
    %3 = memref.load %arg3[%2] : memref<6xi32, #tpu.memory_space<smem>>
    %c1_i32 = arith.constant 1 : i32
    %4 = arith.cmpi eq, %3, %c1_i32 : i32
    %5 = arith.extui %4 : i1 to i32
    %c0_i32 = arith.constant 0 : i32
    %6 = arith.cmpi ne, %5, %c0_i32 : i32
    scf.if %6 {
      %cst = arith.constant 0.000000e+00 : f32
      %27 = vector.broadcast %cst : f32 to vector<8x128xf32>
      %c0 = arith.constant 0 : index
      %c0_9 = arith.constant 0 : index
      %28 = vector.load %arg13[%c0, %c0_9] : memref<8x128xf32, #tpu.memory_space<vmem>>, vector<8x128xf32>
      tpu.vector_store %arg13[%c0, %c0_9], %27 {strides = array<i32>} : memref<8x128xf32, #tpu.memory_space<vmem>>, vector<8x128xf32>,
      %cst_10 = arith.constant 0.000000e+00 : f32
      %29 = vector.broadcast %cst_10 : f32 to vector<8x128xf32>
      %c0_11 = arith.constant 0 : index
      %c0_12 = arith.constant 0 : index
      %30 = vector.load %arg14[%c0_11, %c0_12] : memref<8x128xf32, #tpu.memory_space<vmem>>, vector<8x128xf32>
      tpu.vector_store %arg14[%c0_11, %c0_12], %29 {strides = array<i32>} : memref<8x128xf32, #tpu.memory_space<vmem>>, vector<8x128xf32>,
    } else {
    }
    %c0_i32_0 = arith.constant 0 : i32
    %7 = arith.cmpi eq, %1, %c0_i32_0 : i32
    %8 = arith.extui %7 : i1 to i32
    %c0_i32_1 = arith.constant 0 : i32
    %9 = arith.cmpi ne, %8, %c0_i32_1 : i32
    scf.if %9 {
      %c0 = arith.constant 0 : index
      %c0_9 = arith.constant 0 : index
      %27 = vector.load %arg7[%c0, %c0_9] : memref<16x128xf32, #tpu.memory_space<vmem>>, vector<16x128xf32>
      %c0_10 = arith.constant 0 : index
      %28 = memref.load %arg5[%c0_10] : memref<5xf32, #tpu.memory_space<smem>>
      %29 = vector.broadcast %28 : f32 to vector<16x128xf32>
      %30 = arith.subf %27, %29 : vector<16x128xf32>
      %31 = vector.shape_cast %30 : vector<16x128xf32> to vector<2x8x128xf32>
      %c0_11 = arith.constant 0 : index
      %c0_12 = arith.constant 0 : index
      %32 = vector.load %arg13[%c0_11, %c0_12] : memref<8x128xf32, #tpu.memory_space<vmem>>, vector<8x128xf32>
      %cst = arith.constant dense<0.000000e+00> : vector<8x128xf32>
      %33 = vector.multi_reduction <add>, %31, %cst [0] : vector<2x8x128xf32> to vector<8x128xf32>
      %34 = arith.addf %32, %33 : vector<8x128xf32>
      %c0_13 = arith.constant 0 : index
      %c0_14 = arith.constant 0 : index
      %35 = vector.load %arg13[%c0_13, %c0_14] : memref<8x128xf32, #tpu.memory_space<vmem>>, vector<8x128xf32>
      tpu.vector_store %arg13[%c0_13, %c0_14], %34 {strides = array<i32>} : memref<8x128xf32, #tpu.memory_space<vmem>>, vector<8x128xf32>,
      %c0_15 = arith.constant 0 : index
      %c0_16 = arith.constant 0 : index
      %36 = vector.load %arg14[%c0_15, %c0_16] : memref<8x128xf32, #tpu.memory_space<vmem>>, vector<8x128xf32>
      %37 = arith.mulf %31, %31 : vector<2x8x128xf32>
      %cst_17 = arith.constant dense<0.000000e+00> : vector<8x128xf32>
      %38 = vector.multi_reduction <add>, %37, %cst_17 [0] : vector<2x8x128xf32> to vector<8x128xf32>
      %39 = arith.addf %36, %38 : vector<8x128xf32>
      %c0_18 = arith.constant 0 : index
      %c0_19 = arith.constant 0 : index
      %40 = vector.load %arg14[%c0_18, %c0_19] : memref<8x128xf32, #tpu.memory_space<vmem>>, vector<8x128xf32>
      tpu.vector_store %arg14[%c0_18, %c0_19], %39 {strides = array<i32>} : memref<8x128xf32, #tpu.memory_space<vmem>>, vector<8x128xf32>,
    } else {
    }
    %c1_i32_2 = arith.constant 1 : i32
    %10 = arith.cmpi eq, %1, %c1_i32_2 : i32
    %11 = arith.extui %10 : i1 to i32
    %c0_i32_3 = arith.constant 0 : i32
    %12 = arith.cmpi ne, %11, %c0_i32_3 : i32
    scf.if %12 {
      %c0 = arith.constant 0 : index
      %c0_9 = arith.constant 0 : index
      %27 = vector.load %arg8[%c0, %c0_9] : memref<2x128xf32, #tpu.memory_space<vmem>>, vector<2x128xf32>
      %c1 = arith.constant 1 : index
      %28 = memref.load %arg5[%c1] : memref<5xf32, #tpu.memory_space<smem>>
      %29 = vector.broadcast %28 : f32 to vector<2x128xf32>
      %30 = arith.subf %27, %29 : vector<2x128xf32>
      %c0_10 = arith.constant 0 : index
      %c0_11 = arith.constant 0 : index
      %31 = vector.load %arg13[%c0_10, %c0_11] : memref<8x128xf32, #tpu.memory_space<vmem>>, vector<1x128xf32>
      %cst = arith.constant dense<0.000000e+00> : vector<128xf32>
      %32 = vector.multi_reduction <add>, %30, %cst [0] : vector<2x128xf32> to vector<128xf32>
      %33 = vector.shape_cast %32 : vector<128xf32> to vector<1x128xf32>
      %34 = arith.addf %31, %33 : vector<1x128xf32>
      %c0_12 = arith.constant 0 : index
      %c0_13 = arith.constant 0 : index
      %35 = vector.load %arg13[%c0_12, %c0_13] : memref<8x128xf32, #tpu.memory_space<vmem>>, vector<1x128xf32>
      tpu.vector_store %arg13[%c0_12, %c0_13], %34 {strides = array<i32>} : memref<8x128xf32, #tpu.memory_space<vmem>>, vector<1x128xf32>,
      %c0_14 = arith.constant 0 : index
      %c0_15 = arith.constant 0 : index
      %36 = vector.load %arg14[%c0_14, %c0_15] : memref<8x128xf32, #tpu.memory_space<vmem>>, vector<1x128xf32>
      %37 = arith.mulf %30, %30 : vector<2x128xf32>
      %cst_16 = arith.constant dense<0.000000e+00> : vector<128xf32>
      %38 = vector.multi_reduction <add>, %37, %cst_16 [0] : vector<2x128xf32> to vector<128xf32>
      %39 = vector.shape_cast %38 : vector<128xf32> to vector<1x128xf32>
      %40 = arith.addf %36, %39 : vector<1x128xf32>
      %c0_17 = arith.constant 0 : index
      %c0_18 = arith.constant 0 : index
      %41 = vector.load %arg14[%c0_17, %c0_18] : memref<8x128xf32, #tpu.memory_space<vmem>>, vector<1x128xf32>
      tpu.vector_store %arg14[%c0_17, %c0_18], %40 {strides = array<i32>} : memref<8x128xf32, #tpu.memory_space<vmem>>, vector<1x128xf32>,
    } else {
    }
    %c2_i32 = arith.constant 2 : i32
    %13 = arith.cmpi eq, %1, %c2_i32 : i32
    %14 = arith.extui %13 : i1 to i32
    %c0_i32_4 = arith.constant 0 : i32
    %15 = arith.cmpi ne, %14, %c0_i32_4 : i32
    scf.if %15 {
      %c0 = arith.constant 0 : index
      %c0_9 = arith.constant 0 : index
      %27 = vector.load %arg9[%c0, %c0_9] : memref<4x128xf32, #tpu.memory_space<vmem>>, vector<4x128xf32>
      %c2 = arith.constant 2 : index
      %28 = memref.load %arg5[%c2] : memref<5xf32, #tpu.memory_space<smem>>
      %29 = vector.broadcast %28 : f32 to vector<4x128xf32>
      %30 = arith.subf %27, %29 : vector<4x128xf32>
      %c0_10 = arith.constant 0 : index
      %c0_11 = arith.constant 0 : index
      %31 = vector.load %arg13[%c0_10, %c0_11] : memref<8x128xf32, #tpu.memory_space<vmem>>, vector<1x128xf32>
      %cst = arith.constant dense<0.000000e+00> : vector<128xf32>
      %32 = vector.multi_reduction <add>, %30, %cst [0] : vector<4x128xf32> to vector<128xf32>
      %33 = vector.shape_cast %32 : vector<128xf32> to vector<1x128xf32>
      %34 = arith.addf %31, %33 : vector<1x128xf32>
      %c0_12 = arith.constant 0 : index
      %c0_13 = arith.constant 0 : index
      %35 = vector.load %arg13[%c0_12, %c0_13] : memref<8x128xf32, #tpu.memory_space<vmem>>, vector<1x128xf32>
      tpu.vector_store %arg13[%c0_12, %c0_13], %34 {strides = array<i32>} : memref<8x128xf32, #tpu.memory_space<vmem>>, vector<1x128xf32>,
      %c0_14 = arith.constant 0 : index
      %c0_15 = arith.constant 0 : index
      %36 = vector.load %arg14[%c0_14, %c0_15] : memref<8x128xf32, #tpu.memory_space<vmem>>, vector<1x128xf32>
      %37 = arith.mulf %30, %30 : vector<4x128xf32>
      %cst_16 = arith.constant dense<0.000000e+00> : vector<128xf32>
      %38 = vector.multi_reduction <add>, %37, %cst_16 [0] : vector<4x128xf32> to vector<128xf32>
      %39 = vector.shape_cast %38 : vector<128xf32> to vector<1x128xf32>
      %40 = arith.addf %36, %39 : vector<1x128xf32>
      %c0_17 = arith.constant 0 : index
      %c0_18 = arith.constant 0 : index
      %41 = vector.load %arg14[%c0_17, %c0_18] : memref<8x128xf32, #tpu.memory_space<vmem>>, vector<1x128xf32>
      tpu.vector_store %arg14[%c0_17, %c0_18], %40 {strides = array<i32>} : memref<8x128xf32, #tpu.memory_space<vmem>>, vector<1x128xf32>,
    } else {
    }
    %c3_i32 = arith.constant 3 : i32
    %16 = arith.cmpi eq, %1, %c3_i32 : i32
    %17 = arith.extui %16 : i1 to i32
    %c0_i32_5 = arith.constant 0 : i32
    %18 = arith.cmpi ne, %17, %c0_i32_5 : i32
    scf.if %18 {
      %c0 = arith.constant 0 : index
      %c0_9 = arith.constant 0 : index
      %27 = vector.load %arg10[%c0, %c0_9] : memref<13x128xbf16, #tpu.memory_space<vmem>>, vector<13x128xbf16>
      %28 = arith.extf %27 : vector<13x128xbf16> to vector<13x128xf32>
      %c3 = arith.constant 3 : index
      %29 = memref.load %arg5[%c3] : memref<5xf32, #tpu.memory_space<smem>>
      %30 = vector.broadcast %29 : f32 to vector<13x128xf32>
      %31 = arith.subf %28, %30 : vector<13x128xf32>
      %c0_10 = arith.constant 0 : index
      %c0_11 = arith.constant 0 : index
      %32 = vector.load %arg13[%c0_10, %c0_11] : memref<8x128xf32, #tpu.memory_space<vmem>>, vector<1x128xf32>
      %cst = arith.constant dense<0.000000e+00> : vector<128xf32>
      %33 = vector.multi_reduction <add>, %31, %cst [0] : vector<13x128xf32> to vector<128xf32>
      %34 = vector.shape_cast %33 : vector<128xf32> to vector<1x128xf32>
      %35 = arith.addf %32, %34 : vector<1x128xf32>
      %c0_12 = arith.constant 0 : index
      %c0_13 = arith.constant 0 : index
      %36 = vector.load %arg13[%c0_12, %c0_13] : memref<8x128xf32, #tpu.memory_space<vmem>>, vector<1x128xf32>
      tpu.vector_store %arg13[%c0_12, %c0_13], %35 {strides = array<i32>} : memref<8x128xf32, #tpu.memory_space<vmem>>, vector<1x128xf32>,
      %c0_14 = arith.constant 0 : index
      %c0_15 = arith.constant 0 : index
      %37 = vector.load %arg14[%c0_14, %c0_15] : memref<8x128xf32, #tpu.memory_space<vmem>>, vector<1x128xf32>
      %38 = arith.mulf %31, %31 : vector<13x128xf32>
      %cst_16 = arith.constant dense<0.000000e+00> : vector<128xf32>
      %39 = vector.multi_reduction <add>, %38, %cst_16 [0] : vector<13x128xf32> to vector<128xf32>
      %40 = vector.shape_cast %39 : vector<128xf32> to vector<1x128xf32>
      %41 = arith.addf %37, %40 : vector<1x128xf32>
      %c0_17 = arith.constant 0 : index
      %c0_18 = arith.constant 0 : index
      %42 = vector.load %arg14[%c0_17, %c0_18] : memref<8x128xf32, #tpu.memory_space<vmem>>, vector<1x128xf32>
      tpu.vector_store %arg14[%c0_17, %c0_18], %41 {strides = array<i32>} : memref<8x128xf32, #tpu.memory_space<vmem>>, vector<1x128xf32>,
    } else {
    }
    %c4_i32 = arith.constant 4 : i32
    %19 = arith.cmpi eq, %1, %c4_i32 : i32
    %20 = arith.extui %19 : i1 to i32
    %c0_i32_6 = arith.constant 0 : i32
    %21 = arith.cmpi ne, %20, %c0_i32_6 : i32
    scf.if %21 {
      %c0 = arith.constant 0 : index
      %c0_9 = arith.constant 0 : index
      %27 = vector.load %arg11[%c0, %c0_9] : memref<1024x128xf32, #tpu.memory_space<vmem>>, vector<1024x128xf32>
      %c4 = arith.constant 4 : index
      %28 = memref.load %arg5[%c4] : memref<5xf32, #tpu.memory_space<smem>>
      %29 = vector.broadcast %28 : f32 to vector<1024x128xf32>
      %30 = arith.subf %27, %29 : vector<1024x128xf32>
      %31 = tpu.iota {dimensions = array<i32: 0>} : vector<1024x128xi32>
      %32 = arith.index_cast %arg0 : i32 to index
      %33 = memref.load %arg2[%32] : memref<6xi32, #tpu.memory_space<smem>>
      %34 = vector.broadcast %33 : i32 to vector<1024x128xi32>
      %35 = arith.cmpi slt, %31, %34 : vector<1024x128xi32>
      %cst = arith.constant 0.000000e+00 : f32
      %36 = vector.broadcast %cst : f32 to vector<1024x128xf32>
      %37 = arith.select %35, %30, %36 : vector<1024x128xi1>, vector<1024x128xf32>
      %38 = vector.shape_cast %37 : vector<1024x128xf32> to vector<128x8x128xf32>
      %c0_10 = arith.constant 0 : index
      %c0_11 = arith.constant 0 : index
      %39 = vector.load %arg13[%c0_10, %c0_11] : memref<8x128xf32, #tpu.memory_space<vmem>>, vector<8x128xf32>
      %cst_12 = arith.constant dense<0.000000e+00> : vector<8x128xf32>
      %40 = vector.multi_reduction <add>, %38, %cst_12 [0] : vector<128x8x128xf32> to vector<8x128xf32>
      %41 = arith.addf %39, %40 : vector<8x128xf32>
      %c0_13 = arith.constant 0 : index
      %c0_14 = arith.constant 0 : index
      %42 = vector.load %arg13[%c0_13, %c0_14] : memref<8x128xf32, #tpu.memory_space<vmem>>, vector<8x128xf32>
      tpu.vector_store %arg13[%c0_13, %c0_14], %41 {strides = array<i32>} : memref<8x128xf32, #tpu.memory_space<vmem>>, vector<8x128xf32>,
      %c0_15 = arith.constant 0 : index
      %c0_16 = arith.constant 0 : index
      %43 = vector.load %arg14[%c0_15, %c0_16] : memref<8x128xf32, #tpu.memory_space<vmem>>, vector<8x128xf32>
      %44 = arith.mulf %38, %38 : vector<128x8x128xf32>
      %cst_17 = arith.constant dense<0.000000e+00> : vector<8x128xf32>
      %45 = vector.multi_reduction <add>, %44, %cst_17 [0] : vector<128x8x128xf32> to vector<8x128xf32>
      %46 = arith.addf %43, %45 : vector<8x128xf32>
      %c0_18 = arith.constant 0 : index
      %c0_19 = arith.constant 0 : index
      %47 = vector.load %arg14[%c0_18, %c0_19] : memref<8x128xf32, #tpu.memory_space<vmem>>, vector<8x128xf32>
      tpu.vector_store %arg14[%c0_18, %c0_19], %46 {strides = array<i32>} : memref<8x128xf32, #tpu.memory_space<vmem>>, vector<8x128xf32>,
    } else {
    }
    %22 = arith.index_cast %arg0 : i32 to index
    %23 = memref.load %arg4[%22] : memref<6xi32, #tpu.memory_space<smem>>
    %c1_i32_7 = arith.constant 1 : i32
    %24 = arith.cmpi eq, %23, %c1_i32_7 : i32
    %25 = arith.extui %24 : i1 to i32
    %c0_i32_8 = arith.constant 0 : i32
    %26 = arith.cmpi ne, %25, %c0_i32_8 : i32
    scf.if %26 {
      %27 = arith.index_cast %1 : i32 to index
      %28 = memref.load %arg6[%27] : memref<5xi32, #tpu.memory_space<smem>>
      %29 = arith.sitofp %28 : i32 to f32
      %30 = arith.index_cast %1 : i32 to index
      %31 = memref.load %arg5[%30] : memref<5xf32, #tpu.memory_space<smem>>
      %c0 = arith.constant 0 : index
      %c0_9 = arith.constant 0 : index
      %32 = vector.load %arg13[%c0, %c0_9] : memref<8x128xf32, #tpu.memory_space<vmem>>, vector<8x128xf32>
      %33 = vector.shape_cast %32 : vector<8x128xf32> to vector<1x8x128xf32>
      %cst = arith.constant dense<0.000000e+00> : vector<1xf32>
      %34 = vector.multi_reduction <add>, %33, %cst [1, 2] : vector<1x8x128xf32> to vector<1xf32>
      %35 = vector.shape_cast %34 : vector<1xf32> to vector<1x1x1xf32>
      %36 = vector.extract %35[0, 0, 0] : f32 from vector<1x1x1xf32>
      %37 = vector.broadcast %36 : f32 to vector<1x1xf32>
      %c0_10 = arith.constant 0 : index
      %c0_11 = arith.constant 0 : index
      %38 = vector.load %arg14[%c0_10, %c0_11] : memref<8x128xf32, #tpu.memory_space<vmem>>, vector<8x128xf32>
      %39 = vector.shape_cast %38 : vector<8x128xf32> to vector<1x8x128xf32>
      %cst_12 = arith.constant dense<0.000000e+00> : vector<1xf32>
      %40 = vector.multi_reduction <add>, %39, %cst_12 [1, 2] : vector<1x8x128xf32> to vector<1xf32>
      %41 = vector.shape_cast %40 : vector<1xf32> to vector<1x1x1xf32>
      %42 = vector.extract %41[0, 0, 0] : f32 from vector<1x1x1xf32>
      %43 = vector.broadcast %42 : f32 to vector<1x1xf32>
      %44 = vector.broadcast %29 : f32 to vector<1x1xf32>
      %45 = arith.divf %37, %44 : vector<1x1xf32>
      %46 = vector.broadcast %31 : f32 to vector<1x1xf32>
      %47 = arith.addf %46, %45 : vector<1x1xf32>
      %48 = arith.mulf %37, %37 : vector<1x1xf32>
      %49 = vector.broadcast %29 : f32 to vector<1x1xf32>
      %50 = arith.divf %48, %49 : vector<1x1xf32>
      %51 = arith.subf %43, %50 : vector<1x1xf32>
      %cst_13 = arith.constant 1.000000e+00 : f32
      %52 = arith.subf %29, %cst_13 : f32
      %53 = vector.broadcast %52 : f32 to vector<1x1xf32>
      %54 = arith.divf %51, %53 : vector<1x1xf32>
      %cst_14 = arith.constant 0.000000e+00 : f32
      %55 = vector.broadcast %cst_14 : f32 to vector<1x1xf32>
      %56 = arith.maximumf %54, %55 : vector<1x1xf32>
      %57 = math.sqrt %56 : vector<1x1xf32>
      %58 = arith.addf %47, %57 : vector<1x1xf32>
      %59 = vector.shape_cast %58 : vector<1x1xf32> to vector<1x1x1xf32>
      %60 = vector.shape_cast %59 : vector<1x1x1xf32> to vector<1x1x1xf32>
      %61 = vector.broadcast %60 : vector<1x1x1xf32> to vector<1x8x128xf32>
      %c0_15 = arith.constant 0 : index
      %c0_16 = arith.constant 0 : index
      %c0_17 = arith.constant 0 : index
      %62 = vector.load %arg12[%c0_15, %c0_16, %c0_17] : memref<1x8x128xf32, #tpu.memory_space<vmem>>, vector<1x8x128xf32>
      tpu.vector_store %arg12[%c0_15, %c0_16, %c0_17], %61 {strides = array<i32>} : memref<1x8x128xf32, #tpu.memory_space<vmem>>, vector<1x8x128xf32>,
    } else {
    }
    return
  }
  func.func @transform_0(%arg0: i32, %arg1: memref<6xi32, #tpu.memory_space<smem>>, %arg2: memref<6xi32, #tpu.memory_space<smem>>, %arg3: memref<6xi32, #tpu.memory_space<smem>>, %arg4: memref<6xi32, #tpu.memory_space<smem>>, %arg5: memref<5xf32, #tpu.memory_space<smem>>, %arg6: memref<5xi32, #tpu.memory_space<smem>>) -> (i32, i32) {
    %c0_i32 = arith.constant 0 : i32
    %c0_i32_0 = arith.constant 0 : i32
    %c0_i32_1 = arith.constant 0 : i32
    return %c0_i32, %c0_i32_0 : i32, i32
  }
  func.func @transform_1(%arg0: i32, %arg1: memref<6xi32, #tpu.memory_space<smem>>, %arg2: memref<6xi32, #tpu.memory_space<smem>>, %arg3: memref<6xi32, #tpu.memory_space<smem>>, %arg4: memref<6xi32, #tpu.memory_space<smem>>, %arg5: memref<5xf32, #tpu.memory_space<smem>>, %arg6: memref<5xi32, #tpu.memory_space<smem>>) -> (i32, i32) {
    %c0_i32 = arith.constant 0 : i32
    %c0_i32_0 = arith.constant 0 : i32
    %c0_i32_1 = arith.constant 0 : i32
    return %c0_i32, %c0_i32_0 : i32, i32
  }
  func.func @transform_2(%arg0: i32, %arg1: memref<6xi32, #tpu.memory_space<smem>>, %arg2: memref<6xi32, #tpu.memory_space<smem>>, %arg3: memref<6xi32, #tpu.memory_space<smem>>, %arg4: memref<6xi32, #tpu.memory_space<smem>>, %arg5: memref<5xf32, #tpu.memory_space<smem>>, %arg6: memref<5xi32, #tpu.memory_space<smem>>) -> (i32, i32) {
    %c0_i32 = arith.constant 0 : i32
    %c0_i32_0 = arith.constant 0 : i32
    %c0_i32_1 = arith.constant 0 : i32
    return %c0_i32, %c0_i32_0 : i32, i32
  }
  func.func @transform_3(%arg0: i32, %arg1: memref<6xi32, #tpu.memory_space<smem>>, %arg2: memref<6xi32, #tpu.memory_space<smem>>, %arg3: memref<6xi32, #tpu.memory_space<smem>>, %arg4: memref<6xi32, #tpu.memory_space<smem>>, %arg5: memref<5xf32, #tpu.memory_space<smem>>, %arg6: memref<5xi32, #tpu.memory_space<smem>>) -> (i32, i32) {
    %c0_i32 = arith.constant 0 : i32
    %c0_i32_0 = arith.constant 0 : i32
    %c0_i32_1 = arith.constant 0 : i32
    return %c0_i32, %c0_i32_0 : i32, i32
  }
  func.func @transform_4(%arg0: i32, %arg1: memref<6xi32, #tpu.memory_space<smem>>, %arg2: memref<6xi32, #tpu.memory_space<smem>>, %arg3: memref<6xi32, #tpu.memory_space<smem>>, %arg4: memref<6xi32, #tpu.memory_space<smem>>, %arg5: memref<5xf32, #tpu.memory_space<smem>>, %arg6: memref<5xi32, #tpu.memory_space<smem>>) -> (i32, i32) {
    %c4_i32 = arith.constant 4 : i32
    %0 = arith.subi %arg0, %c4_i32 : i32
    %c0_i32 = arith.constant 0 : i32
    %1 = arith.maxsi %0, %c0_i32 : i32
    %c1_i32 = arith.constant 1 : i32
    %2 = arith.minsi %1, %c1_i32 : i32
    %c0_i32_0 = arith.constant 0 : i32
    %c0_i32_1 = arith.constant 0 : i32
    return %2, %c0_i32_0 : i32, i32
  }
  func.func @transform_5(%arg0: i32, %arg1: memref<6xi32, #tpu.memory_space<smem>>, %arg2: memref<6xi32, #tpu.memory_space<smem>>, %arg3: memref<6xi32, #tpu.memory_space<smem>>, %arg4: memref<6xi32, #tpu.memory_space<smem>>, %arg5: memref<5xf32, #tpu.memory_space<smem>>, %arg6: memref<5xi32, #tpu.memory_space<smem>>) -> (i32, i32, i32) {
    %0 = arith.index_cast %arg0 : i32 to index
    %1 = memref.load %arg1[%0] : memref<6xi32, #tpu.memory_space<smem>>
    %c0_i32 = arith.constant 0 : i32
    %c0_i32_0 = arith.constant 0 : i32
    %c0_i32_1 = arith.constant 0 : i32
    return %1, %c0_i32, %c0_i32_0 : i32, i32, i32
  }
}

</mosaic_0001>

<llo_original>
// kernel: run.1
$region0: #{run.1}
  #allocation0 [shape = 'u32[]', space=smem, size = 0x4, offset = 0x4, fixed_abs, tag = 'smem constant byte address 0x4 - core index']
  #allocation1 [shape = 'u32[144,128]{1,0:T(1,128)}', space=vmem, size = 0x12000, scoped, tag = 'internal scratch']
  #allocation2 [shape = 'f32[8,128]{1,0:T(8,128)}', space=vmem, size = 0x1000, scoped, tag = 'scratch operand']
  #allocation3 [shape = 'f32[8,128]{1,0:T(8,128)}', space=vmem, size = 0x1000, scoped, tag = 'scratch operand']
  #allocation4 [shape = 's32[1]{0}', space=sflag, size = 0x4, scoped, tag = 'scoped memory for run.1']
  #allocation5 [shape = 'u8[512]{0}', space=smem, size = 0x200, scoped, tag = 'prefetched SMEM operand 0']
  #allocation6 [shape = 'u8[512]{0}', space=smem, size = 0x200, scoped, tag = 'prefetched SMEM operand 1']
  #allocation7 [shape = 'u8[512]{0}', space=smem, size = 0x200, scoped, tag = 'prefetched SMEM operand 2']
  #allocation8 [shape = 'u8[512]{0}', space=smem, size = 0x200, scoped, tag = 'prefetched SMEM operand 3']
  #allocation9 [shape = 'u8[512]{0}', space=smem, size = 0x200, scoped, tag = 'prefetched SMEM operand 4']
  #allocation10 [shape = 'u8[512]{0}', space=smem, size = 0x200, scoped, tag = 'prefetched SMEM operand 5']
  %s0 = inlined_call_operand.vmem [shape: s32[6], index: 0, kind: input, shape index: {}]
  %s1 = inlined_call_operand.vmem [shape: s32[6], index: 1, kind: input, shape index: {}]
  %s2 = inlined_call_operand.vmem [shape: s32[6], index: 2, kind: input, shape index: {}]
  %s3 = inlined_call_operand.vmem [shape: s32[6], index: 3, kind: input, shape index: {}]
  %s4 = inlined_call_operand.vmem [shape: f32[5], index: 4, kind: input, shape index: {}]
  %s5 = inlined_call_operand.vmem [shape: s32[5], index: 5, kind: input, shape index: {}]
  %s6 = inlined_call_operand.vmem [shape: f32[16,128], index: 6, kind: input, shape index: {}]
  %s7 = inlined_call_operand.vmem [shape: f32[2,128], index: 7, kind: input, shape index: {}]
  %s8 = inlined_call_operand.vmem [shape: f32[4,128], index: 8, kind: input, shape index: {}]
  %s9 = inlined_call_operand.vmem [shape: bf16[13,128], index: 9, kind: input, shape index: {}]
  %s10 = inlined_call_operand.vmem [shape: f32[1250,128], index: 10, kind: input, shape index: {}]
  %s11 = inlined_call_operand.vmem [shape: f32[5,8,128], index: 11, kind: output, shape index: {}]
  %s12 = sld [smem:[#allocation0]]
  $region81: #{run.1} parent=0
    _
  %s14 = ssub.s32 1, %s12
  %s15 = scalar_select 0, %s14, %s12
  %s16 = sshll.u32 %s0, 4
  %s17 = int_to_ptr.vmem [resolvable:$true] %s16
  %19 = dma.vmem_to_smem %s17, 16, [#allocation5], [#allocation4]
  %s20 = sshll.u32 %s1, 4
  %s21 = int_to_ptr.vmem [resolvable:$true] %s20
  %23 = dma.vmem_to_smem %s21, 16, [#allocation6], [#allocation4]
  %s24 = sshll.u32 %s2, 4
  %s25 = int_to_ptr.vmem [resolvable:$true] %s24
  %27 = dma.vmem_to_smem %s25, 16, [#allocation7], [#allocation4]
  %s28 = sshll.u32 %s3, 4
  %s29 = int_to_ptr.vmem [resolvable:$true] %s28
  %31 = dma.vmem_to_smem %s29, 16, [#allocation8], [#allocation4]
  %s32 = sshll.u32 %s4, 4
  %s33 = int_to_ptr.vmem [resolvable:$true] %s32
  %35 = dma.vmem_to_smem %s33, 16, [#allocation9], [#allocation4]
  %s36 = sshll.u32 %s5, 4
  %s37 = int_to_ptr.vmem [resolvable:$true] %s36
  %39 = dma.vmem_to_smem %s37, 16, [#allocation10], [#allocation4]
  %40 = dma.done [#allocation4], 96
  %41 = sfence
  loop: start=0, step=1, limit=8
  $region2: #{run.1} parent=0 // loop_pre_header
    _
  $region3: #{run.1} parent=0 // loop_header
    %s43 = sphi 0, %s47
    %p44 = scmp.ge.s32.totalorder %s43, 8
    %s51 = sphi 0, %s51
    %s53 = sphi 0, %s51
    %s54 = sphi 0, %s53
    %s68 = sphi 0, %s54
    %s72 = sphi 0, %s72
    %s74 = sphi 0, %s72
    %s75 = sphi 0, %s74
    %s89 = sphi 0, %s75
    %s93 = sphi 0, %s93
    %s95 = sphi 0, %s93
    %s96 = sphi 0, %s95
    %s110 = sphi 0, %s96
    %s114 = sphi 0, %s114
    %s116 = sphi 0, %s114
    %s117 = sphi 0, %s116
    %s131 = sphi 0, %s117
    %s147 = sphi 0, %s149
    %s150 = sphi 0, %s147
    %s151 = sphi 0, %s150
    %s167 = sphi 0, %s151
    %s175 = sphi 0, %s177
    %s178 = sphi 0, %s175
    %s179 = sphi 0, %s178
    %s195 = sphi 0, %s179
  $region4: #{run.1} parent=0 // loop_header_branch
    %46 = sbr.rel (%p44) target = $region8
  $region5: #{run.1} parent=0 // loop_body
    %s48 = ssub.s32 %s43, 1
    %s49 = ssub.s32 %s43, 2
    %s50 = sadd.s32 %s43, 1
    %s52 = sadd.s32 %s51, 1
    %p55 = scmp.eq.s32.totalorder %s43, 5
    %p56 = scmp.ne.s32.totalorder %s51, %s53
    %p57 = scmp.eq.s32.totalorder %s43, 0
    %p58 = por %p56, %p57
    %p59 = scmp.ne.s32.totalorder %s51, %s53
    %p60 = scmp.eq.s32.totalorder %s48, 5
    %p61 = por %p59, %p60
    %p62 = scmp.ne.s32.totalorder %s53, %s54
    %p63 = scmp.eq.s32.totalorder %s48, 0
    %p64 = por %p62, %p63
    %p65 = scmp.ne.s32.totalorder %s53, %s54
    %p66 = scmp.eq.s32.totalorder %s49, 5
    %p67 = por %p65, %p66
    %p69 = scmp.ne.s32.totalorder %s54, %s68
    %p70 = scmp.eq.s32.totalorder %s49, 0
    %p71 = por %p69, %p70
    %s73 = sadd.s32 %s72, 1
    %p76 = scmp.eq.s32.totalorder %s43, 5
    %p77 = scmp.ne.s32.totalorder %s72, %s74
    %p78 = scmp.eq.s32.totalorder %s43, 0
    %p79 = por %p77, %p78
    %p80 = scmp.ne.s32.totalorder %s72, %s74
    %p81 = scmp.eq.s32.totalorder %s48, 5
    %p82 = por %p80, %p81
    %p83 = scmp.ne.s32.totalorder %s74, %s75
    %p84 = scmp.eq.s32.totalorder %s48, 0
    %p85 = por %p83, %p84
    %p86 = scmp.ne.s32.totalorder %s74, %s75
    %p87 = scmp.eq.s32.totalorder %s49, 5
    %p88 = por %p86, %p87
    %p90 = scmp.ne.s32.totalorder %s75, %s89
    %p91 = scmp.eq.s32.totalorder %s49, 0
    %p92 = por %p90, %p91
    %s94 = sadd.s32 %s93, 1
    %p97 = scmp.eq.s32.totalorder %s43, 5
    %p98 = scmp.ne.s32.totalorder %s93, %s95
    %p99 = scmp.eq.s32.totalorder %s43, 0
    %p100 = por %p98, %p99
    %p101 = scmp.ne.s32.totalorder %s93, %s95
    %p102 = scmp.eq.s32.totalorder %s48, 5
    %p103 = por %p101, %p102
    %p104 = scmp.ne.s32.totalorder %s95, %s96
    %p105 = scmp.eq.s32.totalorder %s48, 0
    %p106 = por %p104, %p105
    %p107 = scmp.ne.s32.totalorder %s95, %s96
    %p108 = scmp.eq.s32.totalorder %s49, 5
    %p109 = por %p107, %p108
    %p111 = scmp.ne.s32.totalorder %s96, %s110
    %p112 = scmp.eq.s32.totalorder %s49, 0
    %p113 = por %p111, %p112
    %s115 = sadd.s32 %s114, 1
    %p118 = scmp.eq.s32.totalorder %s43, 5
    %p119 = scmp.ne.s32.totalorder %s114, %s116
    %p120 = scmp.eq.s32.totalorder %s43, 0
    %p121 = por %p119, %p120
    %p122 = scmp.ne.s32.totalorder %s114, %s116
    %p123 = scmp.eq.s32.totalorder %s48, 5
    %p124 = por %p122, %p123
    %p125 = scmp.ne.s32.totalorder %s116, %s117
    %p126 = scmp.eq.s32.totalorder %s48, 0
    %p127 = por %p125, %p126
    %p128 = scmp.ne.s32.totalorder %s116, %s117
    %p129 = scmp.eq.s32.totalorder %s49, 5
    %p130 = por %p128, %p129
    %p132 = scmp.ne.s32.totalorder %s117, %s131
    %p133 = scmp.eq.s32.totalorder %s49, 0
    %p134 = por %p132, %p133
    %s135 = ssub.s32 %s43, 4
    %p136 = scmp.gt.s32.totalorder %s135, 0
    %s137 = scalar_select %p136, %s135, 0
    %p138 = scmp.lt.s32.totalorder %s137, 1
    %s139 = scalar_select %p138, %s137, 1
    %s140 = ssub.s32 %s50, 4
    %p141 = scmp.gt.s32.totalorder %s140, 0
    %s142 = scalar_select %p141, %s140, 0
    %p143 = scmp.lt.s32.totalorder %s142, 1
    %s144 = scalar_select %p143, %s142, 1
    %s145 = ssub.s32 %s139, %s144
    %p146 = scmp.eq.s32.totalorder %s145, 0
    %s148 = sadd.s32 %s147, 1
    %s149 = scalar_select %p146, %s147, %s148
    %p152 = pneg %p146
    %p153 = scmp.eq.s32.totalorder %s43, 5
    %p154 = por %p152, %p153
    %p155 = scmp.ne.s32.totalorder %s147, %s150
    %p156 = scmp.eq.s32.totalorder %s43, 0
    %p157 = por %p155, %p156
    %p158 = scmp.ne.s32.totalorder %s147, %s150
    %p159 = scmp.eq.s32.totalorder %s48, 5
    %p160 = por %p158, %p159
    %p161 = scmp.ne.s32.totalorder %s150, %s151
    %p162 = scmp.eq.s32.totalorder %s48, 0
    %p163 = por %p161, %p162
    %p164 = scmp.ne.s32.totalorder %s150, %s151
    %p165 = scmp.eq.s32.totalorder %s49, 5
    %p166 = por %p164, %p165
    %p168 = scmp.ne.s32.totalorder %s151, %s167
    %p169 = scmp.eq.s32.totalorder %s49, 0
    %p170 = por %p168, %p169
    %s171 = sld [smem:[#allocation5 + %s43]]
    %s172 = sld [smem:[#allocation5 + %s50]]
    %s173 = ssub.s32 %s171, %s172
    %p174 = scmp.eq.s32.totalorder %s173, 0
    %s176 = sadd.s32 %s175, 1
    %s177 = scalar_select %p174, %s175, %s176
    %p180 = pneg %p174
    %p181 = scmp.eq.s32.totalorder %s43, 5
    %p182 = por %p180, %p181
    %p183 = scmp.ne.s32.totalorder %s175, %s178
    %p184 = scmp.eq.s32.totalorder %s43, 0
    %p185 = por %p183, %p184
    %p186 = scmp.ne.s32.totalorder %s175, %s178
    %p187 = scmp.eq.s32.totalorder %s48, 5
    %p188 = por %p186, %p187
    %p189 = scmp.ne.s32.totalorder %s178, %s179
    %p190 = scmp.eq.s32.totalorder %s48, 0
    %p191 = por %p189, %p190
    %p192 = scmp.ne.s32.totalorder %s178, %s179
    %p193 = scmp.eq.s32.totalorder %s49, 5
    %p194 = por %p192, %p193
    %p196 = scmp.ne.s32.totalorder %s179, %s195
    %p197 = scmp.eq.s32.totalorder %s49, 0
    %p198 = por %p196, %p197
    %p199 = scmp.le.s32.totalorder 1, %s43
    %p200 = scmp.lt.s32.totalorder %s43, 7
    %p201 = pnand %p199, %p200
    %p202 = pneg %p201
    // Predicated region
    $region9: #{run.1} parent=5 // pred_check
      _
    $region10: #{run.1} parent=5 // pred_check_branch
      %204 = sbr.rel (%p201) target = $region12
    $region11: #{run.1} parent=5 // pred_region
      %s205 = ssub.s32 %s43, 1
      // Predicated region
      $region13: #{run.1} parent=11 // pred_check
        %p206 = pneg %p64
      $region14: #{run.1} parent=11 // pred_check_branch
        %208 = sbr.rel (%p206) target = $region16
      $region15: #{run.1} parent=11 // pred_region
        _
      $region16: #{run.1} parent=11 // pred_fallthru
        _
      // Predicated region
      $region17: #{run.1} parent=11 // pred_check
        %p209 = pneg %p85
      $region18: #{run.1} parent=11 // pred_check_branch
        %211 = sbr.rel (%p209) target = $region20
      $region19: #{run.1} parent=11 // pred_region
        _
      $region20: #{run.1} parent=11 // pred_fallthru
        _
      // Predicated region
      $region21: #{run.1} parent=11 // pred_check
        %p212 = pneg %p106
      $region22: #{run.1} parent=11 // pred_check_branch
        %214 = sbr.rel (%p212) target = $region24
      $region23: #{run.1} parent=11 // pred_region
        _
      $region24: #{run.1} parent=11 // pred_fallthru
        _
      // Predicated region
      $region25: #{run.1} parent=11 // pred_check
        %p215 = pneg %p127
      $region26: #{run.1} parent=11 // pred_check_branch
        %217 = sbr.rel (%p215) target = $region28
      $region27: #{run.1} parent=11 // pred_region
        _
      $region28: #{run.1} parent=11 // pred_fallthru
        _
    $region12: #{run.1} parent=5 // pred_fallthru
      _
    %p218 = scmp.lt.s32.totalorder %s43, 6
    // Predicated region
    $region29: #{run.1} parent=5 // pred_check
      %p219 = pneg %p218
    $region30: #{run.1} parent=5 // pred_check_branch
      %221 = sbr.rel (%p219) target = $region32
    $region31: #{run.1} parent=5 // pred_region
      // Predicated region
      $region33: #{run.1} parent=31 // pred_check
        %p222 = pneg %p157
      $region34: #{run.1} parent=31 // pred_check_branch
        %224 = sbr.rel (%p222) target = $region36
      $region35: #{run.1} parent=31 // pred_region
        %s225 = ssub.s32 %s43, 4
        %p226 = scmp.gt.s32.totalorder %s225, 0
        %s227 = scalar_select %p226, %s225, 0
        %p228 = scmp.lt.s32.totalorder %s227, 1
        %s229 = scalar_select %p228, %s227, 1
        %s230 = smul.u32 128, %s229
        %s231 = ssub.s32 157, %s230
        %p232 = scmp.lt.s32.totalorder %s231, 128
        %s233 = scalar_select %p232, %s231, 128
        %s234 = smul.u32 128, %s233
        %p235 = scmp.lt.s32.totalorder %s230, 156
        %s236 = scalar_select %p235, %s230, 156
        %s237 = smul.addr %s236, 8
        %s238 = scalar_lea.vmem %s10, %s237
        %s239 = ssub.s32 %s43, 4
        %p240 = scmp.gt.s32.totalorder %s239, 0
        %s241 = scalar_select %p240, %s239, 0
        %p242 = scmp.lt.s32.totalorder %s241, 1
        %s243 = scalar_select %p242, %s241, 1
        %s244 = smul.u32 128, %s243
        %s245 = ssub.s32 157, %s244
        %p246 = scmp.lt.s32.totalorder %s245, 128
        %s247 = scalar_select %p246, %s245, 128
        %s248 = smul.u32 128, %s247
      $region36: #{run.1} parent=31 // pred_fallthru
        _
    $region32: #{run.1} parent=5 // pred_fallthru
      _
    %p249 = scmp.le.s32.totalorder 1, %s43
    %p250 = scmp.lt.s32.totalorder %s43, 7
    %p251 = pnand %p249, %p250
    %p252 = pneg %p251
    // Predicated region
    $region37: #{run.1} parent=5 // pred_check
      _
    $region38: #{run.1} parent=5 // pred_check_branch
      %254 = sbr.rel (%p251) target = $region40
    $region39: #{run.1} parent=5 // pred_region
      %s255 = ssub.s32 %s43, 1
      %p256 = pneg %p64
      %p257 = pneg %p61
      %p258 = pneg %p85
      %p259 = pneg %p82
      %p260 = pneg %p106
      %p261 = pneg %p103
      %p262 = pneg %p127
      %p263 = pneg %p124
      %s264 = ssub.s32 %s48, 4
      %p265 = scmp.gt.s32.totalorder %s264, 0
      %s266 = scalar_select %p265, %s264, 0
      %p267 = scmp.lt.s32.totalorder %s266, 1
      %s268 = scalar_select %p267, %s266, 1
      %s269 = smul.u32 128, %s268
      %s270 = ssub.s32 157, %s269
      %p271 = scmp.lt.s32.totalorder %s270, 128
      %s272 = scalar_select %p271, %s270, 128
      %s273 = smul.u32 128, %s272
      %p274 = scmp.lt.s32.totalorder %s269, 156
      %s275 = scalar_select %p274, %s269, 156
      %s276 = smul.addr %s275, 8
      %s277 = scalar_lea.vmem %s10, %s276
      %p278 = pneg %p163
      %p279 = pneg %p160
      %p280 = pneg %p191
      %p281 = pneg %p188
      %s282 = sld [smem:[#allocation5 + %s48]]
      %p283 = scmp.lt.s32.totalorder %s282, 4
      %s284 = scalar_select %p283, %s282, 4
      %s285 = smul.addr %s284, 8
      %s286 = scalar_lea.vmem %s11, %s285
      %s287 = ssub.s32 %s48, 4
      %p288 = scmp.gt.s32.totalorder %s287, 0
      %s289 = scalar_select %p288, %s287, 0
      %p290 = scmp.lt.s32.totalorder %s289, 1
      %s291 = scalar_select %p290, %s289, 1
      %s292 = smul.u32 128, %s291
      %s293 = ssub.s32 157, %s292
      %p294 = scmp.lt.s32.totalorder %s293, 128
      %s295 = scalar_select %p294, %s293, 128
      %s296 = smul.u32 128, %s295
      %p297 = scmp.lt.s32.totalorder %s292, 156
      %s298 = scalar_select %p297, %s292, 156
      %s299 = smul.addr %s298, 8
      %s300 = scalar_lea.vmem %s10, %s299
      %s301 = ssub.s32 %s48, 4
      %p302 = scmp.gt.s32.totalorder %s301, 0
      %s303 = scalar_select %p302, %s301, 0
      %p304 = scmp.lt.s32.totalorder %s303, 1
      %s305 = scalar_select %p304, %s303, 1
      %s306 = smul.u32 128, %s305
      %s307 = ssub.s32 157, %s306
      %p308 = scmp.lt.s32.totalorder %s307, 128
      %s309 = scalar_select %p308, %s307, 128
      %s310 = smul.u32 128, %s309
      %s311 = sld [smem:[#allocation5 + %s48]]
      %p312 = scmp.lt.s32.totalorder %s311, 4
      %s313 = scalar_select %p312, %s311, 4
      %s314 = smul.addr %s313, 8
      %s315 = scalar_lea.vmem %s11, %s314
      %s316 = sld [smem:[#allocation5 + %s48]]
      %s317 = sld [smem:[#allocation5 + %s48]]
      %s318 = sld [smem:[#allocation7 + %s48]]
      %p319 = scmp.eq.s32.totalorder %s318, 1
      // Predicated region
      $region41: #{run.1} parent=39 // pred_check
        %p320 = pneg %p319
      $region42: #{run.1} parent=39 // pred_check_branch
        %322 = sbr.rel (%p320) target = $region44
      $region43: #{run.1} parent=39 // pred_region
        %323 = vst [vmem:[#allocation2] sm:$0xff] 0.0
        %324 = vst [vmem:[#allocation3] sm:$0xff] 0.0
      $region44: #{run.1} parent=39 // pred_fallthru
        _
      %p325 = scmp.eq.s32.totalorder %s317, 0
      // Predicated region
      $region45: #{run.1} parent=39 // pred_check
        %p326 = pneg %p325
      $region46: #{run.1} parent=39 // pred_check_branch
        %328 = sbr.rel (%p326) target = $region48
      $region47: #{run.1} parent=39 // pred_region
        %v329 = vld [vmem:[%s6] sm:$0xff]
        %v330 = vld [vmem:[%s6 + $0x8] sm:$0xff]
        %s331 = sld [smem:[#allocation9]]
        %v332 = vstv %s331
        %v333 = vsub.f32 %v329, %v332
        %v334 = vsub.f32 %v330, %v332
        %v335 = vld [vmem:[#allocation2] sm:$0xff]
        %v336 = vadd.f32 %v333, %v334
        %v337 = vadd.f32 %v335, %v336
        %338 = vst [vmem:[#allocation2] sm:$0xff] %v337
        %v339 = vld [vmem:[#allocation3] sm:$0xff]
        %v340 = vmul.f32 %v333, %v333
        %v341 = vmul.f32 %v334, %v334
        %v342 = vadd.f32 %v340, %v341
        %v343 = vadd.f32 %v339, %v342
        %344 = vst [vmem:[#allocation3] sm:$0xff] %v343
      $region48: #{run.1} parent=39 // pred_fallthru
        _
      %p345 = scmp.eq.s32.totalorder %s317, 1
      // Predicated region
      $region49: #{run.1} parent=39 // pred_check
        %p346 = pneg %p345
      $region50: #{run.1} parent=39 // pred_check_branch
        %348 = sbr.rel (%p346) target = $region52
      $region51: #{run.1} parent=39 // pred_region
        %v349 = vld [vmem:[%s7] sm:$0x3]
        %s350 = sld [smem:[#allocation9 + $0x1]]
        %v351 = vstv %s350
        %v352 = vsub.f32 %v349, %v351
        %v353 = vld [vmem:[#allocation2] sm:$0x1]
        %vm354 = vcmask 1041408
        %v355 = vsel %vm354, %v352, 0.0
        %v356 = vrot.slane %v355, 4
        %v357 = vadd.f32 %v355, %v356
        %v358 = vrot.slane %v357, 2
        %v359 = vadd.f32 %v357, %v358
        %v360 = vrot.slane %v359, 1
        %v361 = vadd.f32 %v359, %v360
        %v362 = vadd.f32 %v353, %v361
        %363 = vst [vmem:[#allocation2] sm:$0x1] %v362
        %v364 = vld [vmem:[#allocation3] sm:$0x1]
        %v365 = vmul.f32 %v352, %v352
        %v366 = vsel %vm354, %v365, 0.0
        %v367 = vrot.slane %v366, 4
        %v368 = vadd.f32 %v366, %v367
        %v369 = vrot.slane %v368, 2
        %v370 = vadd.f32 %v368, %v369
        %v371 = vrot.slane %v370, 1
        %v372 = vadd.f32 %v370, %v371
        %v373 = vadd.f32 %v364, %v372
        %374 = vst [vmem:[#allocation3] sm:$0x1] %v373
      $region52: #{run.1} parent=39 // pred_fallthru
        _
      %p375 = scmp.eq.s32.totalorder %s317, 2
      // Predicated region
      $region53: #{run.1} parent=39 // pred_check
        %p376 = pneg %p375
      $region54: #{run.1} parent=39 // pred_check_branch
        %378 = sbr.rel (%p376) target = $region56
      $region55: #{run.1} parent=39 // pred_region
        %v379 = vld [vmem:[%s8] sm:$0xf]
        %s380 = sld [smem:[#allocation9 + $0x2]]
        %v381 = vstv %s380
        %v382 = vsub.f32 %v379, %v381
        %v383 = vld [vmem:[#allocation2] sm:$0x1]
        %vm384 = vcmask 1043456
        %v385 = vsel %vm384, %v382, 0.0
        %v386 = vrot.slane %v385, 4
        %v387 = vadd.f32 %v385, %v386
        %v388 = vrot.slane %v387, 2
        %v389 = vadd.f32 %v387, %v388
        %v390 = vrot.slane %v389, 1
        %v391 = vadd.f32 %v389, %v390
        %v392 = vadd.f32 %v383, %v391
        %393 = vst [vmem:[#allocation2] sm:$0x1] %v392
        %v394 = vld [vmem:[#allocation3] sm:$0x1]
        %v395 = vmul.f32 %v382, %v382
        %v396 = vsel %vm384, %v395, 0.0
        %v397 = vrot.slane %v396, 4
        %v398 = vadd.f32 %v396, %v397
        %v399 = vrot.slane %v398, 2
        %v400 = vadd.f32 %v398, %v399
        %v401 = vrot.slane %v400, 1
        %v402 = vadd.f32 %v400, %v401
        %v403 = vadd.f32 %v394, %v402
        %404 = vst [vmem:[#allocation3] sm:$0x1] %v403
      $region56: #{run.1} parent=39 // pred_fallthru
        _
      %p405 = scmp.eq.s32.totalorder %s317, 3
      // Predicated region
      $region57: #{run.1} parent=39 // pred_check
        %p406 = pneg %p405
      $region58: #{run.1} parent=39 // pred_check_branch
        %408 = sbr.rel (%p406) target = $region60
      $region59: #{run.1} parent=39 // pred_region
        %v409 = vld [vmem:[%s9] sm:$0xf]
        %v410 = vld [vmem:[%s9 + $0x4] sm:$0x7]
        %v411 = vunpack.c.l.bf16 %v409
        %v412 = vunpack.c.l.bf16 %v410
        %s413 = sld [smem:[#allocation9 + $0x3]]
        %v414 = vstv %s413
        %v415 = vsub.f32 %v411, %v414
        %v416 = vsub.f32 %v412, %v414
        %v417 = vld [vmem:[#allocation2] sm:$0x1]
        %vm418 = vcmask 1044480
        %v419 = vsel %vm418, %v416, 0.0
        %v420 = vadd.f32 %v415, %v419
        %v421 = vrot.slane %v420, 4
        %v422 = vadd.f32 %v420, %v421
        %v423 = vrot.slane %v422, 2
        %v424 = vadd.f32 %v422, %v423
        %v425 = vrot.slane %v424, 1
        %v426 = vadd.f32 %v424, %v425
        %v427 = vadd.f32 %v417, %v426
        %428 = vst [vmem:[#allocation2] sm:$0x1] %v427
        %v429 = vld [vmem:[#allocation3] sm:$0x1]
        %v430 = vmul.f32 %v415, %v415
        %v431 = vmul.f32 %v416, %v416
        %v432 = vsel %vm418, %v431, 0.0
        %v433 = vadd.f32 %v430, %v432
        %v434 = vrot.slane %v433, 4
        %v435 = vadd.f32 %v433, %v434
        %v436 = vrot.slane %v435, 2
        %v437 = vadd.f32 %v435, %v436
        %v438 = vrot.slane %v437, 1
        %v439 = vadd.f32 %v437, %v438
        %v440 = vadd.f32 %v429, %v439
        %441 = vst [vmem:[#allocation3] sm:$0x1] %v440
      $region60: #{run.1} parent=39 // pred_fallthru
        _
      %p442 = scmp.eq.s32.totalorder %s317, 4
      // Predicated region
      $region61: #{run.1} parent=39 // pred_check
        %p443 = pneg %p442
      $region62: #{run.1} parent=39 // pred_check_branch
        %445 = sbr.rel (%p443) target = $region64
      $region63: #{run.1} parent=39 // pred_region
        %v446 = vld [vmem:[%s300] sm:$0xff]
        %v447 = vld [vmem:[%s300 + $0x8] sm:$0xff]
        %v448 = vld [vmem:[%s300 + $0x10] sm:$0xff]
        %v449 = vld [vmem:[%s300 + $0x18] sm:$0xff]
        %v450 = vld [vmem:[%s300 + $0x20] sm:$0xff]
        %v451 = vld [vmem:[%s300 + $0x28] sm:$0xff]
        %v452 = vld [vmem:[%s300 + $0x30] sm:$0xff]
        %v453 = vld [vmem:[%s300 + $0x38] sm:$0xff]
        %v454 = vld [vmem:[%s300 + $0x40] sm:$0xff]
        %v455 = vld [vmem:[%s300 + $0x48] sm:$0xff]
        %v456 = vld [vmem:[%s300 + $0x50] sm:$0xff]
        %v457 = vld [vmem:[%s300 + $0x58] sm:$0xff]
        %v458 = vld [vmem:[%s300 + $0x60] sm:$0xff]
        %v459 = vld [vmem:[%s300 + $0x68] sm:$0xff]
        %v460 = vld [vmem:[%s300 + $0x70] sm:$0xff]
        %v461 = vld [vmem:[%s300 + $0x78] sm:$0xff]
        %v462 = vld [vmem:[%s300 + $0x80] sm:$0xff]
        %v463 = vld [vmem:[%s300 + $0x88] sm:$0xff]
        %v464 = vld [vmem:[%s300 + $0x90] sm:$0xff]
        %v465 = vld [vmem:[%s300 + $0x98] sm:$0xff]
        %v466 = vld [vmem:[%s300 + $0xa0] sm:$0xff]
        %v467 = vld [vmem:[%s300 + $0xa8] sm:$0xff]
        %v468 = vld [vmem:[%s300 + $0xb0] sm:$0xff]
        %v469 = vld [vmem:[%s300 + $0xb8] sm:$0xff]
        %v470 = vld [vmem:[%s300 + $0xc0] sm:$0xff]
        %v471 = vld [vmem:[%s300 + $0xc8] sm:$0xff]
        %v472 = vld [vmem:[%s300 + $0xd0] sm:$0xff]
        %v473 = vld [vmem:[%s300 + $0xd8] sm:$0xff]
        %v474 = vld [vmem:[%s300 + $0xe0] sm:$0xff]
        %v475 = vld [vmem:[%s300 + $0xe8] sm:$0xff]
        %v476 = vld [vmem:[%s300 + $0xf0] sm:$0xff]
        %v477 = vld [vmem:[%s300 + $0xf8] sm:$0xff]
        %v478 = vld [vmem:[%s300 + $0x100] sm:$0xff]
        %v479 = vld [vmem:[%s300 + $0x108] sm:$0xff]
        %v480 = vld [vmem:[%s300 + $0x110] sm:$0xff]
        %v481 = vld [vmem:[%s300 + $0x118] sm:$0xff]
        %v482 = vld [vmem:[%s300 + $0x120] sm:$0xff]
        %v483 = vld [vmem:[%s300 + $0x128] sm:$0xff]
        %v484 = vld [vmem:[%s300 + $0x130] sm:$0xff]
        %v485 = vld [vmem:[%s300 + $0x138] sm:$0xff]
        %v486 = vld [vmem:[%s300 + $0x140] sm:$0xff]
        %v487 = vld [vmem:[%s300 + $0x148] sm:$0xff]
        %v488 = vld [vmem:[%s300 + $0x150] sm:$0xff]
        %v489 = vld [vmem:[%s300 + $0x158] sm:$0xff]
        %v490 = vld [vmem:[%s300 + $0x160] sm:$0xff]
        %v491 = vld [vmem:[%s300 + $0x168] sm:$0xff]
        %v492 = vld [vmem:[%s300 + $0x170] sm:$0xff]
        %v493 = vld [vmem:[%s300 + $0x178] sm:$0xff]
        %v494 = vld [vmem:[%s300 + $0x180] sm:$0xff]
        %v495 = vld [vmem:[%s300 + $0x188] sm:$0xff]
        %v496 = vld [vmem:[%s300 + $0x190] sm:$0xff]
        %v497 = vld [vmem:[%s300 + $0x198] sm:$0xff]
        %v498 = vld [vmem:[%s300 + $0x1a0] sm:$0xff]
        %v499 = vld [vmem:[%s300 + $0x1a8] sm:$0xff]
        %v500 = vld [vmem:[%s300 + $0x1b0] sm:$0xff]
        %v501 = vld [vmem:[%s300 + $0x1b8] sm:$0xff]
        %v502 = vld [vmem:[%s300 + $0x1c0] sm:$0xff]
        %v503 = vld [vmem:[%s300 + $0x1c8] sm:$0xff]
        %v504 = vld [vmem:[%s300 + $0x1d0] sm:$0xff]
        %v505 = vld [vmem:[%s300 + $0x1d8] sm:$0xff]
        %v506 = vld [vmem:[%s300 + $0x1e0] sm:$0xff]
        %v507 = vld [vmem:[%s300 + $0x1e8] sm:$0xff]
        %v508 = vld [vmem:[%s300 + $0x1f0] sm:$0xff]
        %v509 = vld [vmem:[%s300 + $0x1f8] sm:$0xff]
        %v510 = vld [vmem:[%s300 + $0x200] sm:$0xff]
        %v511 = vld [vmem:[%s300 + $0x208] sm:$0xff]
        %v512 = vld [vmem:[%s300 + $0x210] sm:$0xff]
        %v513 = vld [vmem:[%s300 + $0x218] sm:$0xff]
        %v514 = vld [vmem:[%s300 + $0x220] sm:$0xff]
        %v515 = vld [vmem:[%s300 + $0x228] sm:$0xff]
        %v516 = vld [vmem:[%s300 + $0x230] sm:$0xff]
        %v517 = vld [vmem:[%s300 + $0x238] sm:$0xff]
        %v518 = vld [vmem:[%s300 + $0x240] sm:$0xff]
        %v519 = vld [vmem:[%s300 + $0x248] sm:$0xff]
        %v520 = vld [vmem:[%s300 + $0x250] sm:$0xff]
        %v521 = vld [vmem:[%s300 + $0x258] sm:$0xff]
        %v522 = vld [vmem:[%s300 + $0x260] sm:$0xff]
        %v523 = vld [vmem:[%s300 + $0x268] sm:$0xff]
        %v524 = vld [vmem:[%s300 + $0x270] sm:$0xff]
        %v525 = vld [vmem:[%s300 + $0x278] sm:$0xff]
        %v526 = vld [vmem:[%s300 + $0x280] sm:$0xff]
        %v527 = vld [vmem:[%s300 + $0x288] sm:$0xff]
        %v528 = vld [vmem:[%s300 + $0x290] sm:$0xff]
        %v529 = vld [vmem:[%s300 + $0x298] sm:$0xff]
        %v530 = vld [vmem:[%s300 + $0x2a0] sm:$0xff]
        %v531 = vld [vmem:[%s300 + $0x2a8] sm:$0xff]
        %v532 = vld [vmem:[%s300 + $0x2b0] sm:$0xff]
        %v533 = vld [vmem:[%s300 + $0x2b8] sm:$0xff]
        %v534 = vld [vmem:[%s300 + $0x2c0] sm:$0xff]
        %v535 = vld [vmem:[%s300 + $0x2c8] sm:$0xff]
        %v536 = vld [vmem:[%s300 + $0x2d0] sm:$0xff]
        %v537 = vld [vmem:[%s300 + $0x2d8] sm:$0xff]
        %v538 = vld [vmem:[%s300 + $0x2e0] sm:$0xff]
        %v539 = vld [vmem:[%s300 + $0x2e8] sm:$0xff]
        %v540 = vld [vmem:[%s300 + $0x2f0] sm:$0xff]
        %v541 = vld [vmem:[%s300 + $0x2f8] sm:$0xff]
        %v542 = vld [vmem:[%s300 + $0x300] sm:$0xff]
        %v543 = vld [vmem:[%s300 + $0x308] sm:$0xff]
        %v544 = vld [vmem:[%s300 + $0x310] sm:$0xff]
        %v545 = vld [vmem:[%s300 + $0x318] sm:$0xff]
        %v546 = vld [vmem:[%s300 + $0x320] sm:$0xff]
        %v547 = vld [vmem:[%s300 + $0x328] sm:$0xff]
        %v548 = vld [vmem:[%s300 + $0x330] sm:$0xff]
        %v549 = vld [vmem:[%s300 + $0x338] sm:$0xff]
        %v550 = vld [vmem:[%s300 + $0x340] sm:$0xff]
        %v551 = vld [vmem:[%s300 + $0x348] sm:$0xff]
        %v552 = vld [vmem:[%s300 + $0x350] sm:$0xff]
        %v553 = vld [vmem:[%s300 + $0x358] sm:$0xff]
        %v554 = vld [vmem:[%s300 + $0x360] sm:$0xff]
        %v555 = vld [vmem:[%s300 + $0x368] sm:$0xff]
        %v556 = vld [vmem:[%s300 + $0x370] sm:$0xff]
        %v557 = vld [vmem:[%s300 + $0x378] sm:$0xff]
        %v558 = vld [vmem:[%s300 + $0x380] sm:$0xff]
        %v559 = vld [vmem:[%s300 + $0x388] sm:$0xff]
        %v560 = vld [vmem:[%s300 + $0x390] sm:$0xff]
        %v561 = vld [vmem:[%s300 + $0x398] sm:$0xff]
        %v562 = vld [vmem:[%s300 + $0x3a0] sm:$0xff]
        %v563 = vld [vmem:[%s300 + $0x3a8] sm:$0xff]
        %v564 = vld [vmem:[%s300 + $0x3b0] sm:$0xff]
        %v565 = vld [vmem:[%s300 + $0x3b8] sm:$0xff]
        %v566 = vld [vmem:[%s300 + $0x3c0] sm:$0xff]
        %v567 = vld [vmem:[%s300 + $0x3c8] sm:$0xff]
        %v568 = vld [vmem:[%s300 + $0x3d0] sm:$0xff]
        %v569 = vld [vmem:[%s300 + $0x3d8] sm:$0xff]
        %v570 = vld [vmem:[%s300 + $0x3e0] sm:$0xff]
        %v571 = vld [vmem:[%s300 + $0x3e8] sm:$0xff]
        %v572 = vld [vmem:[%s300 + $0x3f0] sm:$0xff]
        %v573 = vld [vmem:[%s300 + $0x3f8] sm:$0xff]
        %s574 = sld [smem:[#allocation9 + $0x4]]
        %v575 = vstv %s574
        %v576 = vsub.f32 %v446, %v575
        %v577 = vsub.f32 %v447, %v575
        %v578 = vsub.f32 %v448, %v575
        %v579 = vsub.f32 %v449, %v575
        %v580 = vsub.f32 %v450, %v575
        %v581 = vsub.f32 %v451, %v575
        %v582 = vsub.f32 %v452, %v575
        %v583 = vsub.f32 %v453, %v575
        %v584 = vsub.f32 %v454, %v575
        %v585 = vsub.f32 %v455, %v575
        %v586 = vsub.f32 %v456, %v575
        %v587 = vsub.f32 %v457, %v575
        %v588 = vsub.f32 %v458, %v575
        %v589 = vsub.f32 %v459, %v575
        %v590 = vsub.f32 %v460, %v575
        %v591 = vsub.f32 %v461, %v575
        %v592 = vsub.f32 %v462, %v575
        %v593 = vsub.f32 %v463, %v575
        %v594 = vsub.f32 %v464, %v575
        %v595 = vsub.f32 %v465, %v575
        %v596 = vsub.f32 %v466, %v575
        %v597 = vsub.f32 %v467, %v575
        %v598 = vsub.f32 %v468, %v575
        %v599 = vsub.f32 %v469, %v575
        %v600 = vsub.f32 %v470, %v575
        %v601 = vsub.f32 %v471, %v575
        %v602 = vsub.f32 %v472, %v575
        %v603 = vsub.f32 %v473, %v575
        %v604 = vsub.f32 %v474, %v575
        %v605 = vsub.f32 %v475, %v575
        %v606 = vsub.f32 %v476, %v575
        %v607 = vsub.f32 %v477, %v575
        %v608 = vsub.f32 %v478, %v575
        %v609 = vsub.f32 %v479, %v575
        %v610 = vsub.f32 %v480, %v575
        %v611 = vsub.f32 %v481, %v575
        %v612 = vsub.f32 %v482, %v575
        %v613 = vsub.f32 %v483, %v575
        %v614 = vsub.f32 %v484, %v575
        %v615 = vsub.f32 %v485, %v575
        %v616 = vsub.f32 %v486, %v575
        %v617 = vsub.f32 %v487, %v575
        %v618 = vsub.f32 %v488, %v575
        %v619 = vsub.f32 %v489, %v575
        %v620 = vsub.f32 %v490, %v575
        %v621 = vsub.f32 %v491, %v575
        %v622 = vsub.f32 %v492, %v575
        %v623 = vsub.f32 %v493, %v575
        %v624 = vsub.f32 %v494, %v575
        %v625 = vsub.f32 %v495, %v575
        %v626 = vsub.f32 %v496, %v575
        %v627 = vsub.f32 %v497, %v575
        %v628 = vsub.f32 %v498, %v575
        %v629 = vsub.f32 %v499, %v575
        %v630 = vsub.f32 %v500, %v575
        %v631 = vsub.f32 %v501, %v575
        %v632 = vsub.f32 %v502, %v575
        %v633 = vsub.f32 %v503, %v575
        %v634 = vsub.f32 %v504, %v575
        %v635 = vsub.f32 %v505, %v575
        %v636 = vsub.f32 %v506, %v575
        %v637 = vsub.f32 %v507, %v575
        %v638 = vsub.f32 %v508, %v575
        %v639 = vsub.f32 %v509, %v575
        %v640 = vsub.f32 %v510, %v575
        %v641 = vsub.f32 %v511, %v575
        %v642 = vsub.f32 %v512, %v575
        %v643 = vsub.f32 %v513, %v575
        %v644 = vsub.f32 %v514, %v575
        %v645 = vsub.f32 %v515, %v575
        %v646 = vsub.f32 %v516, %v575
        %v647 = vsub.f32 %v517, %v575
        %v648 = vsub.f32 %v518, %v575
        %v649 = vsub.f32 %v519, %v575
        %v650 = vsub.f32 %v520, %v575
        %v651 = vsub.f32 %v521, %v575
        %v652 = vsub.f32 %v522, %v575
        %v653 = vsub.f32 %v523, %v575
        %v654 = vsub.f32 %v524, %v575
        %v655 = vsub.f32 %v525, %v575
        %v656 = vsub.f32 %v526, %v575
        %v657 = vsub.f32 %v527, %v575
        %v658 = vsub.f32 %v528, %v575
        %v659 = vsub.f32 %v529, %v575
        %v660 = vsub.f32 %v530, %v575
        %v661 = vsub.f32 %v531, %v575
        %v662 = vsub.f32 %v532, %v575
        %v663 = vsub.f32 %v533, %v575
        %v664 = vsub.f32 %v534, %v575
        %v665 = vsub.f32 %v535, %v575
        %v666 = vsub.f32 %v536, %v575
        %v667 = vsub.f32 %v537, %v575
        %v668 = vsub.f32 %v538, %v575
        %v669 = vsub.f32 %v539, %v575
        %v670 = vsub.f32 %v540, %v575
        %v671 = vsub.f32 %v541, %v575
        %v672 = vsub.f32 %v542, %v575
        %v673 = vsub.f32 %v543, %v575
        %v674 = vsub.f32 %v544, %v575
        %v675 = vsub.f32 %v545, %v575
        %v676 = vsub.f32 %v546, %v575
        %v677 = vsub.f32 %v547, %v575
        %v678 = vsub.f32 %v548, %v575
        %v679 = vsub.f32 %v549, %v575
        %v680 = vsub.f32 %v550, %v575
        %v681 = vsub.f32 %v551, %v575
        %v682 = vsub.f32 %v552, %v575
        %v683 = vsub.f32 %v553, %v575
        %v684 = vsub.f32 %v554, %v575
        %v685 = vsub.f32 %v555, %v575
        %v686 = vsub.f32 %v556, %v575
        %v687 = vsub.f32 %v557, %v575
        %v688 = vsub.f32 %v558, %v575
        %v689 = vsub.f32 %v559, %v575
        %v690 = vsub.f32 %v560, %v575
        %v691 = vsub.f32 %v561, %v575
        %v692 = vsub.f32 %v562, %v575
        %v693 = vsub.f32 %v563, %v575
        %v694 = vsub.f32 %v564, %v575
        %v695 = vsub.f32 %v565, %v575
        %v696 = vsub.f32 %v566, %v575
        %v697 = vsub.f32 %v567, %v575
        %v698 = vsub.f32 %v568, %v575
        %v699 = vsub.f32 %v569, %v575
        %v700 = vsub.f32 %v570, %v575
        %v701 = vsub.f32 %v571, %v575
        %v702 = vsub.f32 %v572, %v575
        %v703 = vsub.f32 %v573, %v575
        %v704 = vlaneseq
        %v705 = vshrl.u32 %v704, 7
        %v706 = vadd.s32 %v705, 8
        %v707 = vadd.s32 %v705, 16
        %v708 = vadd.s32 %v705, 24
        %v709 = vadd.s32 %v705, 32
        %v710 = vadd.s32 %v705, 40
        %v711 = vadd.s32 %v705, 48
        %v712 = vadd.s32 %v705, 56
        %v713 = vadd.s32 %v705, 64
        %v714 = vadd.s32 %v705, 72
        %v715 = vadd.s32 %v705, 80
        %v716 = vadd.s32 %v705, 88
        %v717 = vadd.s32 %v705, 96
        %v718 = vadd.s32 %v705, 104
        %v719 = vadd.s32 %v705, 112
        %v720 = vadd.s32 %v705, 120
        %v721 = vadd.s32 %v705, 128
        %v722 = vadd.s32 %v705, 136
        %v723 = vadd.s32 %v705, 144
        %v724 = vadd.s32 %v705, 152
        %v725 = vadd.s32 %v705, 160
        %v726 = vadd.s32 %v705, 168
        %v727 = vadd.s32 %v705, 176
        %v728 = vadd.s32 %v705, 184
        %v729 = vadd.s32 %v705, 192
        %v730 = vadd.s32 %v705, 200
        %v731 = vadd.s32 %v705, 208
        %v732 = vadd.s32 %v705, 216
        %v733 = vadd.s32 %v705, 224
        %v734 = vadd.s32 %v705, 232
        %v735 = vadd.s32 %v705, 240
        %v736 = vadd.s32 %v705, 248
        %v737 = vadd.s32 %v705, 256
        %v738 = vadd.s32 %v705, 264
        %v739 = vadd.s32 %v705, 272
        %v740 = vadd.s32 %v705, 280
        %v741 = vadd.s32 %v705, 288
        %v742 = vadd.s32 %v705, 296
        %v743 = vadd.s32 %v705, 304
        %v744 = vadd.s32 %v705, 312
        %v745 = vadd.s32 %v705, 320
        %v746 = vadd.s32 %v705, 328
        %v747 = vadd.s32 %v705, 336
        %v748 = vadd.s32 %v705, 344
        %v749 = vadd.s32 %v705, 352
        %v750 = vadd.s32 %v705, 360
        %v751 = vadd.s32 %v705, 368
        %v752 = vadd.s32 %v705, 376
        %v753 = vadd.s32 %v705, 384
        %v754 = vadd.s32 %v705, 392
        %v755 = vadd.s32 %v705, 400
        %v756 = vadd.s32 %v705, 408
        %v757 = vadd.s32 %v705, 416
        %v758 = vadd.s32 %v705, 424
        %v759 = vadd.s32 %v705, 432
        %v760 = vadd.s32 %v705, 440
        %v761 = vadd.s32 %v705, 448
        %v762 = vadd.s32 %v705, 456
        %v763 = vadd.s32 %v705, 464
        %v764 = vadd.s32 %v705, 472
        %v765 = vadd.s32 %v705, 480
        %v766 = vadd.s32 %v705, 488
        %v767 = vadd.s32 %v705, 496
        %v768 = vadd.s32 %v705, 504
        %v769 = vadd.s32 %v705, 512
        %v770 = vadd.s32 %v705, 520
        %v771 = vadd.s32 %v705, 528
        %v772 = vadd.s32 %v705, 536
        %v773 = vadd.s32 %v705, 544
        %v774 = vadd.s32 %v705, 552
        %v775 = vadd.s32 %v705, 560
        %v776 = vadd.s32 %v705, 568
        %v777 = vadd.s32 %v705, 576
        %v778 = vadd.s32 %v705, 584
        %v779 = vadd.s32 %v705, 592
        %v780 = vadd.s32 %v705, 600
        %v781 = vadd.s32 %v705, 608
        %v782 = vadd.s32 %v705, 616
        %v783 = vadd.s32 %v705, 624
        %v784 = vadd.s32 %v705, 632
        %v785 = vadd.s32 %v705, 640
        %v786 = vadd.s32 %v705, 648
        %v787 = vadd.s32 %v705, 656
        %v788 = vadd.s32 %v705, 664
        %v789 = vadd.s32 %v705, 672
        %v790 = vadd.s32 %v705, 680
        %v791 = vadd.s32 %v705, 688
        %v792 = vadd.s32 %v705, 696
        %v793 = vadd.s32 %v705, 704
        %v794 = vadd.s32 %v705, 712
        %v795 = vadd.s32 %v705, 720
        %v796 = vadd.s32 %v705, 728
        %v797 = vadd.s32 %v705, 736
        %v798 = vadd.s32 %v705, 744
        %v799 = vadd.s32 %v705, 752
        %v800 = vadd.s32 %v705, 760
        %v801 = vadd.s32 %v705, 768
        %v802 = vadd.s32 %v705, 776
        %v803 = vadd.s32 %v705, 784
        %v804 = vadd.s32 %v705, 792
        %v805 = vadd.s32 %v705, 800
        %v806 = vadd.s32 %v705, 808
        %v807 = vadd.s32 %v705, 816
        %v808 = vadd.s32 %v705, 824
        %v809 = vadd.s32 %v705, 832
        %v810 = vadd.s32 %v705, 840
        %v811 = vadd.s32 %v705, 848
        %v812 = vadd.s32 %v705, 856
        %v813 = vadd.s32 %v705, 864
        %v814 = vadd.s32 %v705, 872
        %v815 = vadd.s32 %v705, 880
        %v816 = vadd.s32 %v705, 888
        %v817 = vadd.s32 %v705, 896
        %v818 = vadd.s32 %v705, 904
        %v819 = vadd.s32 %v705, 912
        %v820 = vadd.s32 %v705, 920
        %v821 = vadd.s32 %v705, 928
        %v822 = vadd.s32 %v705, 936
        %v823 = vadd.s32 %v705, 944
        %v824 = vadd.s32 %v705, 952
        %v825 = vadd.s32 %v705, 960
        %v826 = vadd.s32 %v705, 968
        %v827 = vadd.s32 %v705, 976
        %v828 = vadd.s32 %v705, 984
        %v829 = vadd.s32 %v705, 992
        %v830 = vadd.s32 %v705, 1000
        %v831 = vadd.s32 %v705, 1008
        %v832 = vadd.s32 %v705, 1016
        %s833 = sld [smem:[#allocation6 + %s48]]
        %v834 = vstv %s833
        %vm835 = vcmp.lt.s32.totalorder %v705, %v834
        %vm836 = vcmp.lt.s32.totalorder %v706, %v834
        %vm837 = vcmp.lt.s32.totalorder %v707, %v834
        %vm838 = vcmp.lt.s32.totalorder %v708, %v834
        %vm839 = vcmp.lt.s32.totalorder %v709, %v834
        %vm840 = vcmp.lt.s32.totalorder %v710, %v834
        %vm841 = vcmp.lt.s32.totalorder %v711, %v834
        %vm842 = vcmp.lt.s32.totalorder %v712, %v834
        %vm843 = vcmp.lt.s32.totalorder %v713, %v834
        %vm844 = vcmp.lt.s32.totalorder %v714, %v834
        %vm845 = vcmp.lt.s32.totalorder %v715, %v834
        %vm846 = vcmp.lt.s32.totalorder %v716, %v834
        %vm847 = vcmp.lt.s32.totalorder %v717, %v834
        %vm848 = vcmp.lt.s32.totalorder %v718, %v834
        %vm849 = vcmp.lt.s32.totalorder %v719, %v834
        %vm850 = vcmp.lt.s32.totalorder %v720, %v834
        %vm851 = vcmp.lt.s32.totalorder %v721, %v834
        %vm852 = vcmp.lt.s32.totalorder %v722, %v834
        %vm853 = vcmp.lt.s32.totalorder %v723, %v834
        %vm854 = vcmp.lt.s32.totalorder %v724, %v834
        %vm855 = vcmp.lt.s32.totalorder %v725, %v834
        %vm856 = vcmp.lt.s32.totalorder %v726, %v834
        %vm857 = vcmp.lt.s32.totalorder %v727, %v834
        %vm858 = vcmp.lt.s32.totalorder %v728, %v834
        %vm859 = vcmp.lt.s32.totalorder %v729, %v834
        %vm860 = vcmp.lt.s32.totalorder %v730, %v834
        %vm861 = vcmp.lt.s32.totalorder %v731, %v834
        %vm862 = vcmp.lt.s32.totalorder %v732, %v834
        %vm863 = vcmp.lt.s32.totalorder %v733, %v834
        %vm864 = vcmp.lt.s32.totalorder %v734, %v834
        %vm865 = vcmp.lt.s32.totalorder %v735, %v834
        %vm866 = vcmp.lt.s32.totalorder %v736, %v834
        %vm867 = vcmp.lt.s32.totalorder %v737, %v834
        %vm868 = vcmp.lt.s32.totalorder %v738, %v834
        %vm869 = vcmp.lt.s32.totalorder %v739, %v834
        %vm870 = vcmp.lt.s32.totalorder %v740, %v834
        %vm871 = vcmp.lt.s32.totalorder %v741, %v834
        %vm872 = vcmp.lt.s32.totalorder %v742, %v834
        %vm873 = vcmp.lt.s32.totalorder %v743, %v834
        %vm874 = vcmp.lt.s32.totalorder %v744, %v834
        %vm875 = vcmp.lt.s32.totalorder %v745, %v834
        %vm876 = vcmp.lt.s32.totalorder %v746, %v834
        %vm877 = vcmp.lt.s32.totalorder %v747, %v834
        %vm878 = vcmp.lt.s32.totalorder %v748, %v834
        %vm879 = vcmp.lt.s32.totalorder %v749, %v834
        %vm880 = vcmp.lt.s32.totalorder %v750, %v834
        %vm881 = vcmp.lt.s32.totalorder %v751, %v834
        %vm882 = vcmp.lt.s32.totalorder %v752, %v834
        %vm883 = vcmp.lt.s32.totalorder %v753, %v834
        %vm884 = vcmp.lt.s32.totalorder %v754, %v834
        %vm885 = vcmp.lt.s32.totalorder %v755, %v834
        %vm886 = vcmp.lt.s32.totalorder %v756, %v834
        %vm887 = vcmp.lt.s32.totalorder %v757, %v834
        %vm888 = vcmp.lt.s32.totalorder %v758, %v834
        %vm889 = vcmp.lt.s32.totalorder %v759, %v834
        %vm890 = vcmp.lt.s32.totalorder %v760, %v834
        %vm891 = vcmp.lt.s32.totalorder %v761, %v834
        %vm892 = vcmp.lt.s32.totalorder %v762, %v834
        %vm893 = vcmp.lt.s32.totalorder %v763, %v834
        %vm894 = vcmp.lt.s32.totalorder %v764, %v834
        %vm895 = vcmp.lt.s32.totalorder %v765, %v834
        %vm896 = vcmp.lt.s32.totalorder %v766, %v834
        %vm897 = vcmp.lt.s32.totalorder %v767, %v834
        %vm898 = vcmp.lt.s32.totalorder %v768, %v834
        %vm899 = vcmp.lt.s32.totalorder %v769, %v834
        %vm900 = vcmp.lt.s32.totalorder %v770, %v834
        %vm901 = vcmp.lt.s32.totalorder %v771, %v834
        %vm902 = vcmp.lt.s32.totalorder %v772, %v834
        %vm903 = vcmp.lt.s32.totalorder %v773, %v834
        %vm904 = vcmp.lt.s32.totalorder %v774, %v834
        %vm905 = vcmp.lt.s32.totalorder %v775, %v834
        %vm906 = vcmp.lt.s32.totalorder %v776, %v834
        %vm907 = vcmp.lt.s32.totalorder %v777, %v834
        %vm908 = vcmp.lt.s32.totalorder %v778, %v834
        %vm909 = vcmp.lt.s32.totalorder %v779, %v834
        %vm910 = vcmp.lt.s32.totalorder %v780, %v834
        %vm911 = vcmp.lt.s32.totalorder %v781, %v834
        %vm912 = vcmp.lt.s32.totalorder %v782, %v834
        %vm913 = vcmp.lt.s32.totalorder %v783, %v834
        %vm914 = vcmp.lt.s32.totalorder %v784, %v834
        %vm915 = vcmp.lt.s32.totalorder %v785, %v834
        %vm916 = vcmp.lt.s32.totalorder %v786, %v834
        %vm917 = vcmp.lt.s32.totalorder %v787, %v834
        %vm918 = vcmp.lt.s32.totalorder %v788, %v834
        %vm919 = vcmp.lt.s32.totalorder %v789, %v834
        %vm920 = vcmp.lt.s32.totalorder %v790, %v834
        %vm921 = vcmp.lt.s32.totalorder %v791, %v834
        %vm922 = vcmp.lt.s32.totalorder %v792, %v834
        %vm923 = vcmp.lt.s32.totalorder %v793, %v834
        %vm924 = vcmp.lt.s32.totalorder %v794, %v834
        %vm925 = vcmp.lt.s32.totalorder %v795, %v834
        %vm926 = vcmp.lt.s32.totalorder %v796, %v834
        %vm927 = vcmp.lt.s32.totalorder %v797, %v834
        %vm928 = vcmp.lt.s32.totalorder %v798, %v834
        %vm929 = vcmp.lt.s32.totalorder %v799, %v834
        %vm930 = vcmp.lt.s32.totalorder %v800, %v834
        %vm931 = vcmp.lt.s32.totalorder %v801, %v834
        %vm932 = vcmp.lt.s32.totalorder %v802, %v834
        %vm933 = vcmp.lt.s32.totalorder %v803, %v834
        %vm934 = vcmp.lt.s32.totalorder %v804, %v834
        %vm935 = vcmp.lt.s32.totalorder %v805, %v834
        %vm936 = vcmp.lt.s32.totalorder %v806, %v834
        %vm937 = vcmp.lt.s32.totalorder %v807, %v834
        %vm938 = vcmp.lt.s32.totalorder %v808, %v834
        %vm939 = vcmp.lt.s32.totalorder %v809, %v834
        %vm940 = vcmp.lt.s32.totalorder %v810, %v834
        %vm941 = vcmp.lt.s32.totalorder %v811, %v834
        %vm942 = vcmp.lt.s32.totalorder %v812, %v834
        %vm943 = vcmp.lt.s32.totalorder %v813, %v834
        %vm944 = vcmp.lt.s32.totalorder %v814, %v834
        %vm945 = vcmp.lt.s32.totalorder %v815, %v834
        %vm946 = vcmp.lt.s32.totalorder %v816, %v834
        %vm947 = vcmp.lt.s32.totalorder %v817, %v834
        %vm948 = vcmp.lt.s32.totalorder %v818, %v834
        %vm949 = vcmp.lt.s32.totalorder %v819, %v834
        %vm950 = vcmp.lt.s32.totalorder %v820, %v834
        %vm951 = vcmp.lt.s32.totalorder %v821, %v834
        %vm952 = vcmp.lt.s32.totalorder %v822, %v834
        %vm953 = vcmp.lt.s32.totalorder %v823, %v834
        %vm954 = vcmp.lt.s32.totalorder %v824, %v834
        %vm955 = vcmp.lt.s32.totalorder %v825, %v834
        %vm956 = vcmp.lt.s32.totalorder %v826, %v834
        %vm957 = vcmp.lt.s32.totalorder %v827, %v834
        %vm958 = vcmp.lt.s32.totalorder %v828, %v834
        %vm959 = vcmp.lt.s32.totalorder %v829, %v834
        %vm960 = vcmp.lt.s32.totalorder %v830, %v834
        %vm961 = vcmp.lt.s32.totalorder %v831, %v834
        %vm962 = vcmp.lt.s32.totalorder %v832, %v834
        %v963 = vsel %vm835, %v576, 0.0
        %v964 = vsel %vm836, %v577, 0.0
        %v965 = vsel %vm837, %v578, 0.0
        %v966 = vsel %vm838, %v579, 0.0
        %v967 = vsel %vm839, %v580, 0.0
        %v968 = vsel %vm840, %v581, 0.0
        %v969 = vsel %vm841, %v582, 0.0
        %v970 = vsel %vm842, %v583, 0.0
        %v971 = vsel %vm843, %v584, 0.0
        %v972 = vsel %vm844, %v585, 0.0
        %v973 = vsel %vm845, %v586, 0.0
        %v974 = vsel %vm846, %v587, 0.0
        %v975 = vsel %vm847, %v588, 0.0
        %v976 = vsel %vm848, %v589, 0.0
        %v977 = vsel %vm849, %v590, 0.0
        %v978 = vsel %vm850, %v591, 0.0
        %v979 = vsel %vm851, %v592, 0.0
        %v980 = vsel %vm852, %v593, 0.0
        %v981 = vsel %vm853, %v594, 0.0
        %v982 = vsel %vm854, %v595, 0.0
        %v983 = vsel %vm855, %v596, 0.0
        %v984 = vsel %vm856, %v597, 0.0
        %v985 = vsel %vm857, %v598, 0.0
        %v986 = vsel %vm858, %v599, 0.0
        %v987 = vsel %vm859, %v600, 0.0
        %v988 = vsel %vm860, %v601, 0.0
        %v989 = vsel %vm861, %v602, 0.0
        %v990 = vsel %vm862, %v603, 0.0
        %v991 = vsel %vm863, %v604, 0.0
        %v992 = vsel %vm864, %v605, 0.0
        %v993 = vsel %vm865, %v606, 0.0
        %v994 = vsel %vm866, %v607, 0.0
        %v995 = vsel %vm867, %v608, 0.0
        %v996 = vsel %vm868, %v609, 0.0
        %v997 = vsel %vm869, %v610, 0.0
        %v998 = vsel %vm870, %v611, 0.0
        %v999 = vsel %vm871, %v612, 0.0
        %v1000 = vsel %vm872, %v613, 0.0
        %v1001 = vsel %vm873, %v614, 0.0
        %v1002 = vsel %vm874, %v615, 0.0
        %v1003 = vsel %vm875, %v616, 0.0
        %v1004 = vsel %vm876, %v617, 0.0
        %v1005 = vsel %vm877, %v618, 0.0
        %v1006 = vsel %vm878, %v619, 0.0
        %v1007 = vsel %vm879, %v620, 0.0
        %v1008 = vsel %vm880, %v621, 0.0
        %v1009 = vsel %vm881, %v622, 0.0
        %v1010 = vsel %vm882, %v623, 0.0
        %v1011 = vsel %vm883, %v624, 0.0
        %v1012 = vsel %vm884, %v625, 0.0
        %v1013 = vsel %vm885, %v626, 0.0
        %v1014 = vsel %vm886, %v627, 0.0
        %v1015 = vsel %vm887, %v628, 0.0
        %v1016 = vsel %vm888, %v629, 0.0
        %v1017 = vsel %vm889, %v630, 0.0
        %v1018 = vsel %vm890, %v631, 0.0
        %v1019 = vsel %vm891, %v632, 0.0
        %v1020 = vsel %vm892, %v633, 0.0
        %v1021 = vsel %vm893, %v634, 0.0
        %v1022 = vsel %vm894, %v635, 0.0
        %v1023 = vsel %vm895, %v636, 0.0
        %v1024 = vsel %vm896, %v637, 0.0
        %v1025 = vsel %vm897, %v638, 0.0
        %v1026 = vsel %vm898, %v639, 0.0
        %v1027 = vsel %vm899, %v640, 0.0
        %v1028 = vsel %vm900, %v641, 0.0
        %v1029 = vsel %vm901, %v642, 0.0
        %v1030 = vsel %vm902, %v643, 0.0
        %v1031 = vsel %vm903, %v644, 0.0
        %v1032 = vsel %vm904, %v645, 0.0
        %v1033 = vsel %vm905, %v646, 0.0
        %v1034 = vsel %vm906, %v647, 0.0
        %v1035 = vsel %vm907, %v648, 0.0
        %v1036 = vsel %vm908, %v649, 0.0
        %v1037 = vsel %vm909, %v650, 0.0
        %v1038 = vsel %vm910, %v651, 0.0
        %v1039 = vsel %vm911, %v652, 0.0
        %v1040 = vsel %vm912, %v653, 0.0
        %v1041 = vsel %vm913, %v654, 0.0
        %v1042 = vsel %vm914, %v655, 0.0
        %v1043 = vsel %vm915, %v656, 0.0
        %v1044 = vsel %vm916, %v657, 0.0
        %v1045 = vsel %vm917, %v658, 0.0
        %v1046 = vsel %vm918, %v659, 0.0
        %v1047 = vsel %vm919, %v660, 0.0
        %v1048 = vsel %vm920, %v661, 0.0
        %v1049 = vsel %vm921, %v662, 0.0
        %v1050 = vsel %vm922, %v663, 0.0
        %v1051 = vsel %vm923, %v664, 0.0
        %v1052 = vsel %vm924, %v665, 0.0
        %v1053 = vsel %vm925, %v666, 0.0
        %v1054 = vsel %vm926, %v667, 0.0
        %v1055 = vsel %vm927, %v668, 0.0
        %v1056 = vsel %vm928, %v669, 0.0
        %v1057 = vsel %vm929, %v670, 0.0
        %v1058 = vsel %vm930, %v671, 0.0
        %v1059 = vsel %vm931, %v672, 0.0
        %v1060 = vsel %vm932, %v673, 0.0
        %v1061 = vsel %vm933, %v674, 0.0
        %v1062 = vsel %vm934, %v675, 0.0
        %v1063 = vsel %vm935, %v676, 0.0
        %v1064 = vsel %vm936, %v677, 0.0
        %v1065 = vsel %vm937, %v678, 0.0
        %v1066 = vsel %vm938, %v679, 0.0
        %v1067 = vsel %vm939, %v680, 0.0
        %v1068 = vsel %vm940, %v681, 0.0
        %v1069 = vsel %vm941, %v682, 0.0
        %v1070 = vsel %vm942, %v683, 0.0
        %v1071 = vsel %vm943, %v684, 0.0
        %v1072 = vsel %vm944, %v685, 0.0
        %v1073 = vsel %vm945, %v686, 0.0
        %v1074 = vsel %vm946, %v687, 0.0
        %v1075 = vsel %vm947, %v688, 0.0
        %v1076 = vsel %vm948, %v689, 0.0
        %v1077 = vsel %vm949, %v690, 0.0
        %v1078 = vsel %vm950, %v691, 0.0
        %v1079 = vsel %vm951, %v692, 0.0
        %v1080 = vsel %vm952, %v693, 0.0
        %v1081 = vsel %vm953, %v694, 0.0
        %v1082 = vsel %vm954, %v695, 0.0
        %v1083 = vsel %vm955, %v696, 0.0
        %v1084 = vsel %vm956, %v697, 0.0
        %v1085 = vsel %vm957, %v698, 0.0
        %v1086 = vsel %vm958, %v699, 0.0
        %v1087 = vsel %vm959, %v700, 0.0
        %v1088 = vsel %vm960, %v701, 0.0
        %v1089 = vsel %vm961, %v702, 0.0
        %v1090 = vsel %vm962, %v703, 0.0
        %v1091 = vld [vmem:[#allocation2] sm:$0xff]
        %v1092 = vadd.f32 %v963, %v964
        %v1093 = vadd.f32 %v1092, %v965
        %v1094 = vadd.f32 %v1093, %v966
        %v1095 = vadd.f32 %v1094, %v967
        %v1096 = vadd.f32 %v1095, %v968
        %v1097 = vadd.f32 %v1096, %v969
        %v1098 = vadd.f32 %v1097, %v970
        %v1099 = vadd.f32 %v1098, %v971
        %v1100 = vadd.f32 %v1099, %v972
        %v1101 = vadd.f32 %v1100, %v973
        %v1102 = vadd.f32 %v1101, %v974
        %v1103 = vadd.f32 %v1102, %v975
        %v1104 = vadd.f32 %v1103, %v976
        %v1105 = vadd.f32 %v1104, %v977
        %v1106 = vadd.f32 %v1105, %v978
        %v1107 = vadd.f32 %v1106, %v979
        %v1108 = vadd.f32 %v1107, %v980
        %v1109 = vadd.f32 %v1108, %v981
        %v1110 = vadd.f32 %v1109, %v982
        %v1111 = vadd.f32 %v1110, %v983
        %v1112 = vadd.f32 %v1111, %v984
        %v1113 = vadd.f32 %v1112, %v985
        %v1114 = vadd.f32 %v1113, %v986
        %v1115 = vadd.f32 %v1114, %v987
        %v1116 = vadd.f32 %v1115, %v988
        %v1117 = vadd.f32 %v1116, %v989
        %v1118 = vadd.f32 %v1117, %v990
        %v1119 = vadd.f32 %v1118, %v991
        %v1120 = vadd.f32 %v1119, %v992
        %v1121 = vadd.f32 %v1120, %v993
        %v1122 = vadd.f32 %v1121, %v994
        %v1123 = vadd.f32 %v1122, %v995
        %v1124 = vadd.f32 %v1123, %v996
        %v1125 = vadd.f32 %v1124, %v997
        %v1126 = vadd.f32 %v1125, %v998
        %v1127 = vadd.f32 %v1126, %v999
        %v1128 = vadd.f32 %v1127, %v1000
        %v1129 = vadd.f32 %v1128, %v1001
        %v1130 = vadd.f32 %v1129, %v1002
        %v1131 = vadd.f32 %v1130, %v1003
        %v1132 = vadd.f32 %v1131, %v1004
        %v1133 = vadd.f32 %v1132, %v1005
        %v1134 = vadd.f32 %v1133, %v1006
        %v1135 = vadd.f32 %v1134, %v1007
        %v1136 = vadd.f32 %v1135, %v1008
        %v1137 = vadd.f32 %v1136, %v1009
        %v1138 = vadd.f32 %v1137, %v1010
        %v1139 = vadd.f32 %v1138, %v1011
        %v1140 = vadd.f32 %v1139, %v1012
        %v1141 = vadd.f32 %v1140, %v1013
        %v1142 = vadd.f32 %v1141, %v1014
        %v1143 = vadd.f32 %v1142, %v1015
        %v1144 = vadd.f32 %v1143, %v1016
        %v1145 = vadd.f32 %v1144, %v1017
        %v1146 = vadd.f32 %v1145, %v1018
        %v1147 = vadd.f32 %v1146, %v1019
        %v1148 = vadd.f32 %v1147, %v1020
        %v1149 = vadd.f32 %v1148, %v1021
        %v1150 = vadd.f32 %v1149, %v1022
        %v1151 = vadd.f32 %v1150, %v1023
        %v1152 = vadd.f32 %v1151, %v1024
        %v1153 = vadd.f32 %v1152, %v1025
        %v1154 = vadd.f32 %v1153, %v1026
        %v1155 = vadd.f32 %v1154, %v1027
        %v1156 = vadd.f32 %v1155, %v1028
        %v1157 = vadd.f32 %v1156, %v1029
        %v1158 = vadd.f32 %v1157, %v1030
        %v1159 = vadd.f32 %v1158, %v1031
        %v1160 = vadd.f32 %v1159, %v1032
        %v1161 = vadd.f32 %v1160, %v1033
        %v1162 = vadd.f32 %v1161, %v1034
        %v1163 = vadd.f32 %v1162, %v1035
        %v1164 = vadd.f32 %v1163, %v1036
        %v1165 = vadd.f32 %v1164, %v1037
        %v1166 = vadd.f32 %v1165, %v1038
        %v1167 = vadd.f32 %v1166, %v1039
        %v1168 = vadd.f32 %v1167, %v1040
        %v1169 = vadd.f32 %v1168, %v1041
        %v1170 = vadd.f32 %v1169, %v1042
        %v1171 = vadd.f32 %v1170, %v1043
        %v1172 = vadd.f32 %v1171, %v1044
        %v1173 = vadd.f32 %v1172, %v1045
        %v1174 = vadd.f32 %v1173, %v1046
        %v1175 = vadd.f32 %v1174, %v1047
        %v1176 = vadd.f32 %v1175, %v1048
        %v1177 = vadd.f32 %v1176, %v1049
        %v1178 = vadd.f32 %v1177, %v1050
        %v1179 = vadd.f32 %v1178, %v1051
        %v1180 = vadd.f32 %v1179, %v1052
        %v1181 = vadd.f32 %v1180, %v1053
        %v1182 = vadd.f32 %v1181, %v1054
        %v1183 = vadd.f32 %v1182, %v1055
        %v1184 = vadd.f32 %v1183, %v1056
        %v1185 = vadd.f32 %v1184, %v1057
        %v1186 = vadd.f32 %v1185, %v1058
        %v1187 = vadd.f32 %v1186, %v1059
        %v1188 = vadd.f32 %v1187, %v1060
        %v1189 = vadd.f32 %v1188, %v1061
        %v1190 = vadd.f32 %v1189, %v1062
        %v1191 = vadd.f32 %v1190, %v1063
        %v1192 = vadd.f32 %v1191, %v1064
        %v1193 = vadd.f32 %v1192, %v1065
        %v1194 = vadd.f32 %v1193, %v1066
        %v1195 = vadd.f32 %v1194, %v1067
        %v1196 = vadd.f32 %v1195, %v1068
        %v1197 = vadd.f32 %v1196, %v1069
        %v1198 = vadd.f32 %v1197, %v1070
        %v1199 = vadd.f32 %v1198, %v1071
        %v1200 = vadd.f32 %v1199, %v1072
        %v1201 = vadd.f32 %v1200, %v1073
        %v1202 = vadd.f32 %v1201, %v1074
        %v1203 = vadd.f32 %v1202, %v1075
        %v1204 = vadd.f32 %v1203, %v1076
        %v1205 = vadd.f32 %v1204, %v1077
        %v1206 = vadd.f32 %v1205, %v1078
        %v1207 = vadd.f32 %v1206, %v1079
        %v1208 = vadd.f32 %v1207, %v1080
        %v1209 = vadd.f32 %v1208, %v1081
        %v1210 = vadd.f32 %v1209, %v1082
        %v1211 = vadd.f32 %v1210, %v1083
        %v1212 = vadd.f32 %v1211, %v1084
        %v1213 = vadd.f32 %v1212, %v1085
        %v1214 = vadd.f32 %v1213, %v1086
        %v1215 = vadd.f32 %v1214, %v1087
        %v1216 = vadd.f32 %v1215, %v1088
        %v1217 = vadd.f32 %v1216, %v1089
        %v1218 = vadd.f32 %v1217, %v1090
        %v1219 = vadd.f32 %v1091, %v1218
        %1220 = vst [vmem:[#allocation2] sm:$0xff] %v1219
        %v1221 = vld [vmem:[#allocation3] sm:$0xff]
        %v1222 = vmul.f32 %v963, %v963
        %v1223 = vmul.f32 %v964, %v964
        %v1224 = vmul.f32 %v965, %v965
        %v1225 = vmul.f32 %v966, %v966
        %v1226 = vmul.f32 %v967, %v967
        %v1227 = vmul.f32 %v968, %v968
        %v1228 = vmul.f32 %v969, %v969
        %v1229 = vmul.f32 %v970, %v970
        %v1230 = vmul.f32 %v971, %v971
        %v1231 = vmul.f32 %v972, %v972
        %v1232 = vmul.f32 %v973, %v973
        %v1233 = vmul.f32 %v974, %v974
        %v1234 = vmul.f32 %v975, %v975
        %v1235 = vmul.f32 %v976, %v976
        %v1236 = vmul.f32 %v977, %v977
        %v1237 = vmul.f32 %v978, %v978
        %v1238 = vmul.f32 %v979, %v979
        %v1239 = vmul.f32 %v980, %v980
        %v1240 = vmul.f32 %v981, %v981
        %v1241 = vmul.f32 %v982, %v982
        %v1242 = vmul.f32 %v983, %v983
        %v1243 = vmul.f32 %v984, %v984
        %v1244 = vmul.f32 %v985, %v985
        %v1245 = vmul.f32 %v986, %v986
        %v1246 = vmul.f32 %v987, %v987
        %v1247 = vmul.f32 %v988, %v988
        %v1248 = vmul.f32 %v989, %v989
        %v1249 = vmul.f32 %v990, %v990
        %v1250 = vmul.f32 %v991, %v991
        %v1251 = vmul.f32 %v992, %v992
        %v1252 = vmul.f32 %v993, %v993
        %v1253 = vmul.f32 %v994, %v994
        %v1254 = vmul.f32 %v995, %v995
        %v1255 = vmul.f32 %v996, %v996
        %v1256 = vmul.f32 %v997, %v997
        %v1257 = vmul.f32 %v998, %v998
        %v1258 = vmul.f32 %v999, %v999
        %v1259 = vmul.f32 %v1000, %v1000
        %v1260 = vmul.f32 %v1001, %v1001
        %v1261 = vmul.f32 %v1002, %v1002
        %v1262 = vmul.f32 %v1003, %v1003
        %v1263 = vmul.f32 %v1004, %v1004
        %v1264 = vmul.f32 %v1005, %v1005
        %v1265 = vmul.f32 %v1006, %v1006
        %v1266 = vmul.f32 %v1007, %v1007
        %v1267 = vmul.f32 %v1008, %v1008
        %v1268 = vmul.f32 %v1009, %v1009
        %v1269 = vmul.f32 %v1010, %v1010
        %v1270 = vmul.f32 %v1011, %v1011
        %v1271 = vmul.f32 %v1012, %v1012
        %v1272 = vmul.f32 %v1013, %v1013
        %v1273 = vmul.f32 %v1014, %v1014
        %v1274 = vmul.f32 %v1015, %v1015
        %v1275 = vmul.f32 %v1016, %v1016
        %v1276 = vmul.f32 %v1017, %v1017
        %v1277 = vmul.f32 %v1018, %v1018
        %v1278 = vmul.f32 %v1019, %v1019
        %v1279 = vmul.f32 %v1020, %v1020
        %v1280 = vmul.f32 %v1021, %v1021
        %v1281 = vmul.f32 %v1022, %v1022
        %v1282 = vmul.f32 %v1023, %v1023
        %v1283 = vmul.f32 %v1024, %v1024
        %v1284 = vmul.f32 %v1025, %v1025
        %v1285 = vmul.f32 %v1026, %v1026
        %v1286 = vmul.f32 %v1027, %v1027
        %v1287 = vmul.f32 %v1028, %v1028
        %v1288 = vmul.f32 %v1029, %v1029
        %v1289 = vmul.f32 %v1030, %v1030
        %v1290 = vmul.f32 %v1031, %v1031
        %v1291 = vmul.f32 %v1032, %v1032
        %v1292 = vmul.f32 %v1033, %v1033
        %v1293 = vmul.f32 %v1034, %v1034
        %v1294 = vmul.f32 %v1035, %v1035
        %v1295 = vmul.f32 %v1036, %v1036
        %v1296 = vmul.f32 %v1037, %v1037
        %v1297 = vmul.f32 %v1038, %v1038
        %v1298 = vmul.f32 %v1039, %v1039
        %v1299 = vmul.f32 %v1040, %v1040
        %v1300 = vmul.f32 %v1041, %v1041
        %v1301 = vmul.f32 %v1042, %v1042
        %v1302 = vmul.f32 %v1043, %v1043
        %v1303 = vmul.f32 %v1044, %v1044
        %v1304 = vmul.f32 %v1045, %v1045
        %v1305 = vmul.f32 %v1046, %v1046
        %v1306 = vmul.f32 %v1047, %v1047
        %v1307 = vmul.f32 %v1048, %v1048
        %v1308 = vmul.f32 %v1049, %v1049
        %v1309 = vmul.f32 %v1050, %v1050
        %v1310 = vmul.f32 %v1051, %v1051
        %v1311 = vmul.f32 %v1052, %v1052
        %v1312 = vmul.f32 %v1053, %v1053
        %v1313 = vmul.f32 %v1054, %v1054
        %v1314 = vmul.f32 %v1055, %v1055
        %v1315 = vmul.f32 %v1056, %v1056
        %v1316 = vmul.f32 %v1057, %v1057
        %v1317 = vmul.f32 %v1058, %v1058
        %v1318 = vmul.f32 %v1059, %v1059
        %v1319 = vmul.f32 %v1060, %v1060
        %v1320 = vmul.f32 %v1061, %v1061
        %v1321 = vmul.f32 %v1062, %v1062
        %v1322 = vmul.f32 %v1063, %v1063
        %v1323 = vmul.f32 %v1064, %v1064
        %v1324 = vmul.f32 %v1065, %v1065
        %v1325 = vmul.f32 %v1066, %v1066
        %v1326 = vmul.f32 %v1067, %v1067
        %v1327 = vmul.f32 %v1068, %v1068
        %v1328 = vmul.f32 %v1069, %v1069
        %v1329 = vmul.f32 %v1070, %v1070
        %v1330 = vmul.f32 %v1071, %v1071
        %v1331 = vmul.f32 %v1072, %v1072
        %v1332 = vmul.f32 %v1073, %v1073
        %v1333 = vmul.f32 %v1074, %v1074
        %v1334 = vmul.f32 %v1075, %v1075
        %v1335 = vmul.f32 %v1076, %v1076
        %v1336 = vmul.f32 %v1077, %v1077
        %v1337 = vmul.f32 %v1078, %v1078
        %v1338 = vmul.f32 %v1079, %v1079
        %v1339 = vmul.f32 %v1080, %v1080
        %v1340 = vmul.f32 %v1081, %v1081
        %v1341 = vmul.f32 %v1082, %v1082
        %v1342 = vmul.f32 %v1083, %v1083
        %v1343 = vmul.f32 %v1084, %v1084
        %v1344 = vmul.f32 %v1085, %v1085
        %v1345 = vmul.f32 %v1086, %v1086
        %v1346 = vmul.f32 %v1087, %v1087
        %v1347 = vmul.f32 %v1088, %v1088
        %v1348 = vmul.f32 %v1089, %v1089
        %v1349 = vmul.f32 %v1090, %v1090
        %v1350 = vadd.f32 %v1222, %v1223
        %v1351 = vadd.f32 %v1350, %v1224
        %v1352 = vadd.f32 %v1351, %v1225
        %v1353 = vadd.f32 %v1352, %v1226
        %v1354 = vadd.f32 %v1353, %v1227
        %v1355 = vadd.f32 %v1354, %v1228
        %v1356 = vadd.f32 %v1355, %v1229
        %v1357 = vadd.f32 %v1356, %v1230
        %v1358 = vadd.f32 %v1357, %v1231
        %v1359 = vadd.f32 %v1358, %v1232
        %v1360 = vadd.f32 %v1359, %v1233
        %v1361 = vadd.f32 %v1360, %v1234
        %v1362 = vadd.f32 %v1361, %v1235
        %v1363 = vadd.f32 %v1362, %v1236
        %v1364 = vadd.f32 %v1363, %v1237
        %v1365 = vadd.f32 %v1364, %v1238
        %v1366 = vadd.f32 %v1365, %v1239
        %v1367 = vadd.f32 %v1366, %v1240
        %v1368 = vadd.f32 %v1367, %v1241
        %v1369 = vadd.f32 %v1368, %v1242
        %v1370 = vadd.f32 %v1369, %v1243
        %v1371 = vadd.f32 %v1370, %v1244
        %v1372 = vadd.f32 %v1371, %v1245
        %v1373 = vadd.f32 %v1372, %v1246
        %v1374 = vadd.f32 %v1373, %v1247
        %v1375 = vadd.f32 %v1374, %v1248
        %v1376 = vadd.f32 %v1375, %v1249
        %v1377 = vadd.f32 %v1376, %v1250
        %v1378 = vadd.f32 %v1377, %v1251
        %v1379 = vadd.f32 %v1378, %v1252
        %v1380 = vadd.f32 %v1379, %v1253
        %v1381 = vadd.f32 %v1380, %v1254
        %v1382 = vadd.f32 %v1381, %v1255
        %v1383 = vadd.f32 %v1382, %v1256
        %v1384 = vadd.f32 %v1383, %v1257
        %v1385 = vadd.f32 %v1384, %v1258
        %v1386 = vadd.f32 %v1385, %v1259
        %v1387 = vadd.f32 %v1386, %v1260
        %v1388 = vadd.f32 %v1387, %v1261
        %v1389 = vadd.f32 %v1388, %v1262
        %v1390 = vadd.f32 %v1389, %v1263
        %v1391 = vadd.f32 %v1390, %v1264
        %v1392 = vadd.f32 %v1391, %v1265
        %v1393 = vadd.f32 %v1392, %v1266
        %v1394 = vadd.f32 %v1393, %v1267
        %v1395 = vadd.f32 %v1394, %v1268
        %v1396 = vadd.f32 %v1395, %v1269
        %v1397 = vadd.f32 %v1396, %v1270
        %v1398 = vadd.f32 %v1397, %v1271
        %v1399 = vadd.f32 %v1398, %v1272
        %v1400 = vadd.f32 %v1399, %v1273
        %v1401 = vadd.f32 %v1400, %v1274
        %v1402 = vadd.f32 %v1401, %v1275
        %v1403 = vadd.f32 %v1402, %v1276
        %v1404 = vadd.f32 %v1403, %v1277
        %v1405 = vadd.f32 %v1404, %v1278
        %v1406 = vadd.f32 %v1405, %v1279
        %v1407 = vadd.f32 %v1406, %v1280
        %v1408 = vadd.f32 %v1407, %v1281
        %v1409 = vadd.f32 %v1408, %v1282
        %v1410 = vadd.f32 %v1409, %v1283
        %v1411 = vadd.f32 %v1410, %v1284
        %v1412 = vadd.f32 %v1411, %v1285
        %v1413 = vadd.f32 %v1412, %v1286
        %v1414 = vadd.f32 %v1413, %v1287
        %v1415 = vadd.f32 %v1414, %v1288
        %v1416 = vadd.f32 %v1415, %v1289
        %v1417 = vadd.f32 %v1416, %v1290
        %v1418 = vadd.f32 %v1417, %v1291
        %v1419 = vadd.f32 %v1418, %v1292
        %v1420 = vadd.f32 %v1419, %v1293
        %v1421 = vadd.f32 %v1420, %v1294
        %v1422 = vadd.f32 %v1421, %v1295
        %v1423 = vadd.f32 %v1422, %v1296
        %v1424 = vadd.f32 %v1423, %v1297
        %v1425 = vadd.f32 %v1424, %v1298
        %v1426 = vadd.f32 %v1425, %v1299
        %v1427 = vadd.f32 %v1426, %v1300
        %v1428 = vadd.f32 %v1427, %v1301
        %v1429 = vadd.f32 %v1428, %v1302
        %v1430 = vadd.f32 %v1429, %v1303
        %v1431 = vadd.f32 %v1430, %v1304
        %v1432 = vadd.f32 %v1431, %v1305
        %v1433 = vadd.f32 %v1432, %v1306
        %v1434 = vadd.f32 %v1433, %v1307
        %v1435 = vadd.f32 %v1434, %v1308
        %v1436 = vadd.f32 %v1435, %v1309
        %v1437 = vadd.f32 %v1436, %v1310
        %v1438 = vadd.f32 %v1437, %v1311
        %v1439 = vadd.f32 %v1438, %v1312
        %v1440 = vadd.f32 %v1439, %v1313
        %v1441 = vadd.f32 %v1440, %v1314
        %v1442 = vadd.f32 %v1441, %v1315
        %v1443 = vadd.f32 %v1442, %v1316
        %v1444 = vadd.f32 %v1443, %v1317
        %v1445 = vadd.f32 %v1444, %v1318
        %v1446 = vadd.f32 %v1445, %v1319
        %v1447 = vadd.f32 %v1446, %v1320
        %v1448 = vadd.f32 %v1447, %v1321
        %v1449 = vadd.f32 %v1448, %v1322
        %v1450 = vadd.f32 %v1449, %v1323
        %v1451 = vadd.f32 %v1450, %v1324
        %v1452 = vadd.f32 %v1451, %v1325
        %v1453 = vadd.f32 %v1452, %v1326
        %v1454 = vadd.f32 %v1453, %v1327
        %v1455 = vadd.f32 %v1454, %v1328
        %v1456 = vadd.f32 %v1455, %v1329
        %v1457 = vadd.f32 %v1456, %v1330
        %v1458 = vadd.f32 %v1457, %v1331
        %v1459 = vadd.f32 %v1458, %v1332
        %v1460 = vadd.f32 %v1459, %v1333
        %v1461 = vadd.f32 %v1460, %v1334
        %v1462 = vadd.f32 %v1461, %v1335
        %v1463 = vadd.f32 %v1462, %v1336
        %v1464 = vadd.f32 %v1463, %v1337
        %v1465 = vadd.f32 %v1464, %v1338
        %v1466 = vadd.f32 %v1465, %v1339
        %v1467 = vadd.f32 %v1466, %v1340
        %v1468 = vadd.f32 %v1467, %v1341
        %v1469 = vadd.f32 %v1468, %v1342
        %v1470 = vadd.f32 %v1469, %v1343
        %v1471 = vadd.f32 %v1470, %v1344
        %v1472 = vadd.f32 %v1471, %v1345
        %v1473 = vadd.f32 %v1472, %v1346
        %v1474 = vadd.f32 %v1473, %v1347
        %v1475 = vadd.f32 %v1474, %v1348
        %v1476 = vadd.f32 %v1475, %v1349
        %v1477 = vadd.f32 %v1221, %v1476
        %1478 = vst [vmem:[#allocation3] sm:$0xff] %v1477
      $region64: #{run.1} parent=39 // pred_fallthru
        _
      %s1479 = sld [smem:[#allocation8 + %s48]]
      %p1480 = scmp.eq.s32.totalorder %s1479, 1
      // Predicated region
      $region65: #{run.1} parent=39 // pred_check
        %p1481 = pneg %p1480
      $region66: #{run.1} parent=39 // pred_check_branch
        %1483 = sbr.rel (%p1481) target = $region68
      $region67: #{run.1} parent=39 // pred_region
        %s1484 = sld [smem:[#allocation10 + %s317]]
        %s1485 = scvt.s32.f32 %s1484
        %s1486 = sld [smem:[#allocation9 + %s317]]
        %v1487 = vld [vmem:[#allocation2] sm:$0xff]
        %1488 = vadd.xlane.f32.xlu0 %v1487
        %v1489 = vpop.xlane.xlu0 %1488
        %v1490 = vrot.slane %v1489, 4
        %v1491 = vadd.f32 %v1489, %v1490
        %v1492 = vrot.slane %v1491, 2
        %v1493 = vadd.f32 %v1491, %v1492
        %v1494 = vrot.slane %v1493, 1
        %v1495 = vadd.f32 %v1493, %v1494
        %s1496 = vtos %v1495
        %v1497 = vstv %s1496
        %v1498 = vld [vmem:[#allocation3] sm:$0xff]
        %1499 = vadd.xlane.f32.xlu0 %v1498
        %v1500 = vpop.xlane.xlu0 %1499
        %v1501 = vrot.slane %v1500, 4
        %v1502 = vadd.f32 %v1500, %v1501
        %v1503 = vrot.slane %v1502, 2
        %v1504 = vadd.f32 %v1502, %v1503
        %v1505 = vrot.slane %v1504, 1
        %v1506 = vadd.f32 %v1504, %v1505
        %s1507 = vtos %v1506
        %v1508 = vstv %s1507
        %v1509 = vstv %s1485
        %v1510 = vrcp.pop %v1509
        %v1511 = vmul.f32 %v1497, %v1510
        %v1512 = vstv %s1486
        %v1513 = vadd.f32 %v1512, %v1511
        %v1514 = vmul.f32 %v1497, %v1497
        %v1515 = vmul.f32 %v1514, %v1510
        %v1516 = vsub.f32 %v1508, %v1515
        %s1517 = ssub.f32 %s1485, 1.0
        %v1518 = vstv %s1517
        %v1519 = vrcp.pop %v1518
        %v1520 = vmul.f32 %v1516, %v1519
        %v1521 = vmax.f32 %v1520, 0.0
        %v1522 = vrsqrt.pop %v1521
        %v1523 = vmul.f32 %v1521, %v1522
        %vm1524 = vcmp.eq.f32.partialorder %v1521, inf
        %v1525 = vsel %vm1524, %v1521, %v1523
        %vm1526 = vcmp.eq.f32.partialorder %v1521, 0.0
        %v1527 = vand.u32 %v1521, 2147483648
        %v1528 = vsel %vm1526, %v1527, %v1525
        %v1529 = vadd.f32 %v1513, %v1528
        %1530 = vst [vmem:[%s315] sm:$0xff] %v1529
      $region68: #{run.1} parent=39 // pred_fallthru
        _
      %s1531 = sld [smem:[#allocation5 + %s48]]
      %p1532 = scmp.lt.s32.totalorder %s1531, 4
      %s1533 = scalar_select %p1532, %s1531, 4
      %s1534 = smul.addr %s1533, 8
      %s1535 = scalar_lea.vmem %s11, %s1534
      // Predicated region
      $region69: #{run.1} parent=39 // pred_check
        %p1536 = pneg %p188
      $region70: #{run.1} parent=39 // pred_check_branch
        %1538 = sbr.rel (%p1536) target = $region72
      $region71: #{run.1} parent=39 // pred_region
        %s1539 = sld [smem:[#allocation5 + %s48]]
      $region72: #{run.1} parent=39 // pred_fallthru
        _
    $region40: #{run.1} parent=5 // pred_fallthru
      _
    %p1540 = scmp.le.s32.totalorder 2, %s43
    // Predicated region
    $region73: #{run.1} parent=5 // pred_check
      %p1541 = pneg %p1540
    $region74: #{run.1} parent=5 // pred_check_branch
      %1543 = sbr.rel (%p1541) target = $region76
    $region75: #{run.1} parent=5 // pred_region
      %s1544 = ssub.s32 %s43, 2
      // Predicated region
      $region77: #{run.1} parent=75 // pred_check
        %p1545 = pneg %p194
      $region78: #{run.1} parent=75 // pred_check_branch
        %1547 = sbr.rel (%p1545) target = $region80
      $region79: #{run.1} parent=75 // pred_region
        %s1548 = sld [smem:[#allocation5 + %s49]]
        %p1549 = scmp.lt.s32.totalorder %s1548, 4
        %s1550 = scalar_select %p1549, %s1548, 4
        %s1551 = smul.addr %s1550, 8
        %s1552 = scalar_lea.vmem %s11, %s1551
      $region80: #{run.1} parent=75 // pred_fallthru
        _
    $region76: #{run.1} parent=5 // pred_fallthru
      _
  $region6: #{run.1} parent=0 // loop_footer
    %s47 = sadd.s32 1, %s43
  $region7: #{run.1} parent=0 // loop_footer_branch
    %42 = sbr.rel target = $region3
  $region8: #{run.1} parent=0 // loop_exit
    _

</llo_original>
